<compile_context>
chip_gen: v6e
topology: v6e:2x2x1
jax: 0.10.0
libtpu: 0.0.40
codegen_flags: <defaults>
</compile_context>

<pallas_src>
import jax
import jax.numpy as jnp
from jax import lax
from jax.experimental import pallas as pl
from jax.experimental.pallas import tpu as pltpu


def _propagator_kernel(a_in_ref, a_out_ref, s_in_ref, s_out_ref, s_cur_ref,
                       w_ref, b_ref, out_ref):
    tb, n_node, _ = a_in_ref.shape
    d = s_cur_ref.shape[-1]
    m = tb * n_node

    # Batched message aggregation on the MXU (one dot_general for all TB graphs).
    a_in = jnp.einsum(
        "bne,bed->bnd", a_in_ref[...], s_in_ref[...],
        preferred_element_type=jnp.float32,
    ).reshape(m, d)                       # leading-dim collapse; n_node % 8 == 0
    a_out = jnp.einsum(
        "bne,bed->bnd", a_out_ref[...], s_out_ref[...],
        preferred_element_type=jnp.float32,
    ).reshape(m, d)
    s_cur = s_cur_ref[...].astype(jnp.float32)   # gating math in f32 (v5e-safe)

    def mm(x, w):
        return jnp.dot(x, w, preferred_element_type=jnp.float32)

    # w_ref rows: [Wir, Wor, Wcr, Wiz, Woz, Wcz, Wih, Woh, Wch], each (D, D).
    # Per-gate sums of matmuls: identical math to the PyTorch concat form,
    # but every matmul output starts at lane offset 0 (no slices / concats).
    r = jax.nn.sigmoid(mm(a_in, w_ref[0]) + mm(a_out, w_ref[1])
                       + mm(s_cur, w_ref[2]) + b_ref[0])
    z = jax.nn.sigmoid(mm(a_in, w_ref[3]) + mm(a_out, w_ref[4])
                       + mm(s_cur, w_ref[5]) + b_ref[1])
    h_hat = jnp.tanh(mm(a_in, w_ref[6]) + mm(a_out, w_ref[7])
                     + mm(r * s_cur, w_ref[8]) + b_ref[2])

    # output = (1 - z) * s_cur + z * h_hat, written with one fewer multiply.
    # Note: store is D lanes wide (masked vst when D < 128); a lane-dense
    # (TB, n_node*D) repack would require an in-kernel lane relayout that is
    # intentionally not attempted here (see header comment).
    out_ref[...] = (s_cur + z * (h_hat - s_cur)).astype(out_ref.dtype)


def propagator_forward(state_in, state_out, state_cur, A, params, *,
                       batch_tile=None, input_dtype=jnp.float32,
                       vmem_limit_bytes=48 * 1024 * 1024):
    """GGNN Propogator forward as a batch-tiled Pallas TPU kernel."""
    B, n_node, two_ne = A.shape
    ne = two_ne // 2
    D = state_cur.shape[-1]

    # --- weights: split each (D, 3D) PyTorch gate weight per input block -----
    wr, br, wz, bz, wh, bh = params
    wr_t = jnp.asarray(wr, jnp.float32).T     # (3D, D), input-major
    wz_t = jnp.asarray(wz, jnp.float32).T
    wh_t = jnp.asarray(wh, jnp.float32).T

    def split3(wt):
        return wt[:D], wt[D:2 * D], wt[2 * D:]

    wir, wor, wcr = split3(wr_t)
    wiz, woz, wcz = split3(wz_t)
    wih, woh, wch = split3(wh_t)
    W = jnp.stack([wir, wor, wcr, wiz, woz, wcz, wih, woh, wch])       # (9, D, D)
    bias = jnp.stack([jnp.asarray(br, jnp.float32),
                      jnp.asarray(bz, jnp.float32),
                      jnp.asarray(bh, jnp.float32)]).reshape(3, 1, D)  # (3, 1, D)

    # Split A in the wrapper (free layout plumbing; no in-kernel lane slices).
    A_in = A[:, :, :ne]
    A_out = A[:, :, ne:]

    # Pad node axis to a multiple of 8 so the flattened row blocks always
    # satisfy the (8, 128) sublane rule, for any batch_tile.  Padded node rows
    # produce throwaway outputs that are sliced off at the end.
    n_node_pad = -(-n_node // 8) * 8
    node_pad = n_node_pad - n_node
    if node_pad:
        pad_nodes = lambda x: jnp.pad(x, ((0, 0), (0, node_pad), (0, 0)))
        A_in, A_out, state_cur = map(pad_nodes, (A_in, A_out, state_cur))

    # Optional bf16 for the big DMA'd tensors (weights stay f32; accum is f32).
    A_in = A_in.astype(input_dtype)
    A_out = A_out.astype(input_dtype)
    state_in = state_in.astype(input_dtype)
    state_out = state_out.astype(input_dtype)
    state_cur = state_cur.astype(input_dtype)

    # --- VMEM-budgeted batch tile --------------------------------------------
    isz = jnp.dtype(input_dtype).itemsize
    per_graph = 2 * (2 * n_node_pad * ne * isz     # A_in + A_out (double-buffered)
                     + 2 * ne * D * isz            # state_in + state_out
                     + n_node_pad * D * isz        # state_cur
                     + n_node_pad * D * 4)         # f32 output
    per_graph += 10 * n_node_pad * D * 4           # in-kernel f32 intermediates
    if batch_tile is None:
        # ~half the VMEM limit for the per-step working set; ~1 MiB headroom
        # for the replicated weights/biases and compiler scratch.
        budget = max(vmem_limit_bytes // 2 - (1 << 20), 1 << 20)
        bt_cap = max(1, budget // per_graph)
        # Keep >= 2 grid steps when B > 1: software pipelining + v7x megacore.
        batch_tile = int(min(bt_cap, max(1, -(-B // 2))))
    batch_tile = int(max(1, min(batch_tile, B)))
    n_steps = -(-B // batch_tile)
    b_pad = n_steps * batch_tile

    pad = b_pad - B
    if pad:
        pad_batch = lambda x: jnp.pad(x, ((0, pad),) + ((0, 0),) * (x.ndim - 1))
        A_in, A_out, state_in, state_out, state_cur = map(
            pad_batch, (A_in, A_out, state_in, state_out, state_cur))

    m_tile = batch_tile * n_node_pad
    s_cur_flat = state_cur.reshape(b_pad * n_node_pad, D)

    out_flat = pl.pallas_call(
        _propagator_kernel,
        out_shape=jax.ShapeDtypeStruct((b_pad * n_node_pad, D), jnp.float32),
        grid_spec=pltpu.PrefetchScalarGridSpec(
            num_scalar_prefetch=0,
            grid=(n_steps,),
            in_specs=[
                pl.BlockSpec((batch_tile, n_node_pad, ne), lambda b: (b, 0, 0)),  # A_in
                pl.BlockSpec((batch_tile, n_node_pad, ne), lambda b: (b, 0, 0)),  # A_out
                pl.BlockSpec((batch_tile, ne, D), lambda b: (b, 0, 0)),           # state_in
                pl.BlockSpec((batch_tile, ne, D), lambda b: (b, 0, 0)),           # state_out
                pl.BlockSpec((m_tile, D), lambda b: (b, 0)),                      # state_cur
                pl.BlockSpec((9, D, D), lambda b: (0, 0, 0)),                     # weights
                pl.BlockSpec((3, 1, D), lambda b: (0, 0, 0)),                     # biases
            ],
            out_specs=pl.BlockSpec((m_tile, D), lambda b: (b, 0)),
        ),
        compiler_params=pltpu.CompilerParams(
            dimension_semantics=("parallel",),        # batch axis shards across TCs
            vmem_limit_bytes=int(vmem_limit_bytes),
        ),
    )(A_in, A_out, state_in, state_out, s_cur_flat, W, bias)

    return out_flat.reshape(b_pad, n_node_pad, D)[:B, :n_node]


def _reference_forward(state_in, state_out, state_cur, A, params):
    """Plain-JAX reference mirroring the PyTorch module (high-precision dots)."""
    wr, br, wz, bz, wh, bh = params
    ne = state_in.shape[1]
    hp = lax.Precision.HIGHEST
    A_in, A_out = A[:, :, :ne], A[:, :, ne:]
    a_in = jnp.einsum("bne,bed->bnd", A_in, state_in, precision=hp)
    a_out = jnp.einsum("bne,bed->bnd", A_out, state_out, precision=hp)
    a = jnp.concatenate([a_in, a_out, state_cur], axis=2)
    r = jax.nn.sigmoid(jnp.dot(a, wr.T, precision=hp) + br)
    z = jax.nn.sigmoid(jnp.dot(a, wz.T, precision=hp) + bz)
    joined = jnp.concatenate([a_in, a_out, r * state_cur], axis=2)
    h_hat = jnp.tanh(jnp.dot(joined, wh.T, precision=hp) + bh)
    return (1.0 - z) * state_cur + z * h_hat


if __name__ == "__main__":
    def make_inputs(key, B, state_dim, n_node, n_edge_types):
        ne = n_node * n_edge_types
        ks = jax.random.split(key, 10)
        state_in = jax.random.normal(ks[0], (B, ne, state_dim), jnp.float32)
        state_out = jax.random.normal(ks[1], (B, ne, state_dim), jnp.float32)
        state_cur = jax.random.normal(ks[2], (B, n_node, state_dim), jnp.float32)
        A = jax.random.normal(ks[3], (B, n_node, 2 * ne), jnp.float32)
        bound = 1.0 / jnp.sqrt(3.0 * state_dim)

        def lin(kw, kb):
            w = jax.random.uniform(kw, (state_dim, 3 * state_dim), jnp.float32,
                                   -bound, bound)
            b = jax.random.uniform(kb, (state_dim,), jnp.float32, -bound, bound)
            return w, b

        wr, br = lin(ks[4], ks[5])
        wz, bz = lin(ks[6], ks[7])
        wh, bh = lin(ks[8], ks[9])
        return state_in, state_out, state_cur, A, (wr, br, wz, bz, wh, bh)

    key_a, key_b = jax.random.split(jax.random.PRNGKey(0))

    # Config 1: n_node multiple of 8; default (VMEM-budgeted) tiling -> 2 steps.
    s_in, s_out, s_cur, A, params = make_inputs(key_a, B=5, state_dim=32,
                                                n_node=8, n_edge_types=2)
    ref = _reference_forward(s_in, s_out, s_cur, A, params)
    out = jax.block_until_ready(propagator_forward(s_in, s_out, s_cur, A, params))
    assert out.shape == ref.shape
    assert jnp.allclose(out, ref, atol=2e-3, rtol=2e-3), "mismatch (f32, default tile)"

    # Config 2: odd n_node (exercises node padding) + explicit small batch tile
    # (exercises multi-step grid and batch padding).
    s_in2, s_out2, s_cur2, A2, params2 = make_inputs(key_b, B=3, state_dim=32,
                                                     n_node=5, n_edge_types=2)
    ref2 = _reference_forward(s_in2, s_out2, s_cur2, A2, params2)
    out2 = jax.block_until_ready(
        propagator_forward(s_in2, s_out2, s_cur2, A2, params2, batch_tile=2))
    assert out2.shape == ref2.shape
    assert jnp.allclose(out2, ref2, atol=2e-3, rtol=2e-3), "mismatch (f32, padded nodes)"

    # Config 3: bf16 inputs (halved DMA bytes), f32 accumulation & gating.
    out3 = jax.block_until_ready(
        propagator_forward(s_in, s_out, s_cur, A, params,
                           input_dtype=jnp.bfloat16))
    assert out3.shape == ref.shape
    assert jnp.allclose(out3, ref, atol=5e-2, rtol=5e-2), "mismatch (bf16 inputs)"

    print("KERNEL_OK")
</pallas_src>

<mosaic_0001>
module attributes {stable_mosaic.version = 11 : i64} {
  func.func @_propagator_kernel(%arg0: i32, %arg1: memref<3x8x16xf32, #tpu.memory_space<vmem>>, %arg2: memref<3x8x16xf32, #tpu.memory_space<vmem>>, %arg3: memref<3x16x32xf32, #tpu.memory_space<vmem>>, %arg4: memref<3x16x32xf32, #tpu.memory_space<vmem>>, %arg5: memref<24x32xf32, #tpu.memory_space<vmem>>, %arg6: memref<9x32x32xf32, #tpu.memory_space<vmem>>, %arg7: memref<3x1x32xf32, #tpu.memory_space<vmem>>, %arg8: memref<24x32xf32, #tpu.memory_space<vmem>>) attributes {dimension_semantics = [#tpu.dimension_semantics<parallel>], iteration_bounds = array<i64: 2>, scalar_prefetch = 0 : i64, scratch_operands = 0 : i64, tpu.core_type = #tpu.core_type<tc>, window_params = [{transform_indices = @transform_0, window_bounds = array<i64: 3, 8, 16>}, {transform_indices = @transform_1, window_bounds = array<i64: 3, 8, 16>}, {transform_indices = @transform_2, window_bounds = array<i64: 3, 16, 32>}, {transform_indices = @transform_3, window_bounds = array<i64: 3, 16, 32>}, {transform_indices = @transform_4, window_bounds = array<i64: 24, 32>}, {pipeline_mode = #tpu.pipeline_mode<synchronous>, transform_indices = @transform_5, window_bounds = array<i64: 9, 32, 32>}, {pipeline_mode = #tpu.pipeline_mode<synchronous>, transform_indices = @transform_6, window_bounds = array<i64: 3, 1, 32>}, {transform_indices = @transform_7, window_bounds = array<i64: 24, 32>}]} {
    %c0 = arith.constant 0 : index
    %c0_0 = arith.constant 0 : index
    %c0_1 = arith.constant 0 : index
    %0 = vector.load %arg1[%c0, %c0_0, %c0_1] : memref<3x8x16xf32, #tpu.memory_space<vmem>>, vector<3x8x16xf32>
    %c0_2 = arith.constant 0 : index
    %c0_3 = arith.constant 0 : index
    %c0_4 = arith.constant 0 : index
    %1 = vector.load %arg3[%c0_2, %c0_3, %c0_4] : memref<3x16x32xf32, #tpu.memory_space<vmem>>, vector<3x16x32xf32>
    "tpu.trace_start"() <{level = 10 : i32, message = "bne,bed->bnd"}> : () -> ()
    %cst = arith.constant dense<0.000000e+00> : vector<3x8x32xf32>
    %2 = tpu.matmul %0, %1, %cst {dimension_numbers = #tpu.dot_dimension_numbers<[2], [1], [1], [2], [0, 0, 0, 1, 1, 2], [0], [0]>} : vector<3x8x16xf32>, vector<3x16x32xf32>, vector<3x8x32xf32> -> vector<3x8x32xf32>
    "tpu.trace_stop"() : () -> ()
    %3 = vector.shape_cast %2 : vector<3x8x32xf32> to vector<24x32xf32>
    %c0_5 = arith.constant 0 : index
    %c0_6 = arith.constant 0 : index
    %c0_7 = arith.constant 0 : index
    %4 = vector.load %arg2[%c0_5, %c0_6, %c0_7] : memref<3x8x16xf32, #tpu.memory_space<vmem>>, vector<3x8x16xf32>
    %c0_8 = arith.constant 0 : index
    %c0_9 = arith.constant 0 : index
    %c0_10 = arith.constant 0 : index
    %5 = vector.load %arg4[%c0_8, %c0_9, %c0_10] : memref<3x16x32xf32, #tpu.memory_space<vmem>>, vector<3x16x32xf32>
    "tpu.trace_start"() <{level = 10 : i32, message = "bne,bed->bnd"}> : () -> ()
    %cst_11 = arith.constant dense<0.000000e+00> : vector<3x8x32xf32>
    %6 = tpu.matmul %4, %5, %cst_11 {dimension_numbers = #tpu.dot_dimension_numbers<[2], [1], [1], [2], [0, 0, 0, 1, 1, 2], [0], [0]>} : vector<3x8x16xf32>, vector<3x16x32xf32>, vector<3x8x32xf32> -> vector<3x8x32xf32>
    "tpu.trace_stop"() : () -> ()
    %7 = vector.shape_cast %6 : vector<3x8x32xf32> to vector<24x32xf32>
    %c0_12 = arith.constant 0 : index
    %c0_13 = arith.constant 0 : index
    %8 = vector.load %arg5[%c0_12, %c0_13] : memref<24x32xf32, #tpu.memory_space<vmem>>, vector<24x32xf32>
    %c0_14 = arith.constant 0 : index
    %c0_15 = arith.constant 0 : index
    %c0_16 = arith.constant 0 : index
    %9 = vector.load %arg6[%c0_14, %c0_15, %c0_16] : memref<9x32x32xf32, #tpu.memory_space<vmem>>, vector<1x32x32xf32>
    %10 = vector.shape_cast %9 : vector<1x32x32xf32> to vector<32x32xf32>
    %cst_17 = arith.constant dense<0.000000e+00> : vector<24x32xf32>
    %11 = tpu.matmul %3, %10, %cst_17 {dimension_numbers = #tpu.dot_dimension_numbers<[1], [0], [0], [1], [0, 0, 1, 1], [], []>} : vector<24x32xf32>, vector<32x32xf32>, vector<24x32xf32> -> vector<24x32xf32>
    %c1 = arith.constant 1 : index
    %c0_18 = arith.constant 0 : index
    %c0_19 = arith.constant 0 : index
    %12 = vector.load %arg6[%c1, %c0_18, %c0_19] : memref<9x32x32xf32, #tpu.memory_space<vmem>>, vector<1x32x32xf32>
    %13 = vector.shape_cast %12 : vector<1x32x32xf32> to vector<32x32xf32>
    %cst_20 = arith.constant dense<0.000000e+00> : vector<24x32xf32>
    %14 = tpu.matmul %7, %13, %cst_20 {dimension_numbers = #tpu.dot_dimension_numbers<[1], [0], [0], [1], [0, 0, 1, 1], [], []>} : vector<24x32xf32>, vector<32x32xf32>, vector<24x32xf32> -> vector<24x32xf32>
    %15 = arith.addf %11, %14 : vector<24x32xf32>
    %c2 = arith.constant 2 : index
    %c0_21 = arith.constant 0 : index
    %c0_22 = arith.constant 0 : index
    %16 = vector.load %arg6[%c2, %c0_21, %c0_22] : memref<9x32x32xf32, #tpu.memory_space<vmem>>, vector<1x32x32xf32>
    %17 = vector.shape_cast %16 : vector<1x32x32xf32> to vector<32x32xf32>
    %cst_23 = arith.constant dense<0.000000e+00> : vector<24x32xf32>
    %18 = tpu.matmul %8, %17, %cst_23 {dimension_numbers = #tpu.dot_dimension_numbers<[1], [0], [0], [1], [0, 0, 1, 1], [], []>} : vector<24x32xf32>, vector<32x32xf32>, vector<24x32xf32> -> vector<24x32xf32>
    %19 = arith.addf %15, %18 : vector<24x32xf32>
    %c0_24 = arith.constant 0 : index
    %c0_25 = arith.constant 0 : index
    %c0_26 = arith.constant 0 : index
    %20 = vector.load %arg7[%c0_24, %c0_25, %c0_26] : memref<3x1x32xf32, #tpu.memory_space<vmem>>, vector<1x1x32xf32>
    %21 = vector.shape_cast %20 : vector<1x1x32xf32> to vector<1x32xf32>
    %22 = vector.broadcast %21 : vector<1x32xf32> to vector<24x32xf32>
    %23 = arith.addf %19, %22 : vector<24x32xf32>
    %24 = arith.negf %23 : vector<24x32xf32>
    %25 = math.exp %24 : vector<24x32xf32>
    %cst_27 = arith.constant 1.000000e+00 : f32
    %26 = vector.broadcast %cst_27 : f32 to vector<24x32xf32>
    %27 = arith.addf %26, %25 : vector<24x32xf32>
    %28 = arith.divf %26, %27 : vector<24x32xf32>
    %c3 = arith.constant 3 : index
    %c0_28 = arith.constant 0 : index
    %c0_29 = arith.constant 0 : index
    %29 = vector.load %arg6[%c3, %c0_28, %c0_29] : memref<9x32x32xf32, #tpu.memory_space<vmem>>, vector<1x32x32xf32>
    %30 = vector.shape_cast %29 : vector<1x32x32xf32> to vector<32x32xf32>
    %cst_30 = arith.constant dense<0.000000e+00> : vector<24x32xf32>
    %31 = tpu.matmul %3, %30, %cst_30 {dimension_numbers = #tpu.dot_dimension_numbers<[1], [0], [0], [1], [0, 0, 1, 1], [], []>} : vector<24x32xf32>, vector<32x32xf32>, vector<24x32xf32> -> vector<24x32xf32>
    %c4 = arith.constant 4 : index
    %c0_31 = arith.constant 0 : index
    %c0_32 = arith.constant 0 : index
    %32 = vector.load %arg6[%c4, %c0_31, %c0_32] : memref<9x32x32xf32, #tpu.memory_space<vmem>>, vector<1x32x32xf32>
    %33 = vector.shape_cast %32 : vector<1x32x32xf32> to vector<32x32xf32>
    %cst_33 = arith.constant dense<0.000000e+00> : vector<24x32xf32>
    %34 = tpu.matmul %7, %33, %cst_33 {dimension_numbers = #tpu.dot_dimension_numbers<[1], [0], [0], [1], [0, 0, 1, 1], [], []>} : vector<24x32xf32>, vector<32x32xf32>, vector<24x32xf32> -> vector<24x32xf32>
    %35 = arith.addf %31, %34 : vector<24x32xf32>
    %c5 = arith.constant 5 : index
    %c0_34 = arith.constant 0 : index
    %c0_35 = arith.constant 0 : index
    %36 = vector.load %arg6[%c5, %c0_34, %c0_35] : memref<9x32x32xf32, #tpu.memory_space<vmem>>, vector<1x32x32xf32>
    %37 = vector.shape_cast %36 : vector<1x32x32xf32> to vector<32x32xf32>
    %cst_36 = arith.constant dense<0.000000e+00> : vector<24x32xf32>
    %38 = tpu.matmul %8, %37, %cst_36 {dimension_numbers = #tpu.dot_dimension_numbers<[1], [0], [0], [1], [0, 0, 1, 1], [], []>} : vector<24x32xf32>, vector<32x32xf32>, vector<24x32xf32> -> vector<24x32xf32>
    %39 = arith.addf %35, %38 : vector<24x32xf32>
    %c1_37 = arith.constant 1 : index
    %c0_38 = arith.constant 0 : index
    %c0_39 = arith.constant 0 : index
    %40 = vector.load %arg7[%c1_37, %c0_38, %c0_39] : memref<3x1x32xf32, #tpu.memory_space<vmem>>, vector<1x1x32xf32>
    %41 = vector.shape_cast %40 : vector<1x1x32xf32> to vector<1x32xf32>
    %42 = vector.broadcast %41 : vector<1x32xf32> to vector<24x32xf32>
    %43 = arith.addf %39, %42 : vector<24x32xf32>
    %44 = arith.negf %43 : vector<24x32xf32>
    %45 = math.exp %44 : vector<24x32xf32>
    %cst_40 = arith.constant 1.000000e+00 : f32
    %46 = vector.broadcast %cst_40 : f32 to vector<24x32xf32>
    %47 = arith.addf %46, %45 : vector<24x32xf32>
    %48 = arith.divf %46, %47 : vector<24x32xf32>
    %c6 = arith.constant 6 : index
    %c0_41 = arith.constant 0 : index
    %c0_42 = arith.constant 0 : index
    %49 = vector.load %arg6[%c6, %c0_41, %c0_42] : memref<9x32x32xf32, #tpu.memory_space<vmem>>, vector<1x32x32xf32>
    %50 = vector.shape_cast %49 : vector<1x32x32xf32> to vector<32x32xf32>
    %cst_43 = arith.constant dense<0.000000e+00> : vector<24x32xf32>
    %51 = tpu.matmul %3, %50, %cst_43 {dimension_numbers = #tpu.dot_dimension_numbers<[1], [0], [0], [1], [0, 0, 1, 1], [], []>} : vector<24x32xf32>, vector<32x32xf32>, vector<24x32xf32> -> vector<24x32xf32>
    %c7 = arith.constant 7 : index
    %c0_44 = arith.constant 0 : index
    %c0_45 = arith.constant 0 : index
    %52 = vector.load %arg6[%c7, %c0_44, %c0_45] : memref<9x32x32xf32, #tpu.memory_space<vmem>>, vector<1x32x32xf32>
    %53 = vector.shape_cast %52 : vector<1x32x32xf32> to vector<32x32xf32>
    %cst_46 = arith.constant dense<0.000000e+00> : vector<24x32xf32>
    %54 = tpu.matmul %7, %53, %cst_46 {dimension_numbers = #tpu.dot_dimension_numbers<[1], [0], [0], [1], [0, 0, 1, 1], [], []>} : vector<24x32xf32>, vector<32x32xf32>, vector<24x32xf32> -> vector<24x32xf32>
    %55 = arith.addf %51, %54 : vector<24x32xf32>
    %56 = arith.mulf %28, %8 : vector<24x32xf32>
    %c8 = arith.constant 8 : index
    %c0_47 = arith.constant 0 : index
    %c0_48 = arith.constant 0 : index
    %57 = vector.load %arg6[%c8, %c0_47, %c0_48] : memref<9x32x32xf32, #tpu.memory_space<vmem>>, vector<1x32x32xf32>
    %58 = vector.shape_cast %57 : vector<1x32x32xf32> to vector<32x32xf32>
    %cst_49 = arith.constant dense<0.000000e+00> : vector<24x32xf32>
    %59 = tpu.matmul %56, %58, %cst_49 {dimension_numbers = #tpu.dot_dimension_numbers<[1], [0], [0], [1], [0, 0, 1, 1], [], []>} : vector<24x32xf32>, vector<32x32xf32>, vector<24x32xf32> -> vector<24x32xf32>
    %60 = arith.addf %55, %59 : vector<24x32xf32>
    %c2_50 = arith.constant 2 : index
    %c0_51 = arith.constant 0 : index
    %c0_52 = arith.constant 0 : index
    %61 = vector.load %arg7[%c2_50, %c0_51, %c0_52] : memref<3x1x32xf32, #tpu.memory_space<vmem>>, vector<1x1x32xf32>
    %62 = vector.shape_cast %61 : vector<1x1x32xf32> to vector<1x32xf32>
    %63 = vector.broadcast %62 : vector<1x32xf32> to vector<24x32xf32>
    %64 = arith.addf %60, %63 : vector<24x32xf32>
    %65 = math.tanh %64 : vector<24x32xf32>
    %66 = arith.subf %65, %8 : vector<24x32xf32>
    %67 = arith.mulf %48, %66 : vector<24x32xf32>
    %68 = arith.addf %8, %67 : vector<24x32xf32>
    %c0_53 = arith.constant 0 : index
    %c0_54 = arith.constant 0 : index
    %69 = vector.load %arg8[%c0_53, %c0_54] : memref<24x32xf32, #tpu.memory_space<vmem>>, vector<24x32xf32>
    tpu.vector_store %arg8[%c0_53, %c0_54], %68 {strides = array<i32>} : memref<24x32xf32, #tpu.memory_space<vmem>>, vector<24x32xf32>,
    return
  }
  func.func @transform_0(%arg0: i32) -> (i32, i32, i32) {
    %c0_i32 = arith.constant 0 : i32
    %c0_i32_0 = arith.constant 0 : i32
    %c0_i32_1 = arith.constant 0 : i32
    return %arg0, %c0_i32, %c0_i32_0 : i32, i32, i32
  }
  func.func @transform_1(%arg0: i32) -> (i32, i32, i32) {
    %c0_i32 = arith.constant 0 : i32
    %c0_i32_0 = arith.constant 0 : i32
    %c0_i32_1 = arith.constant 0 : i32
    return %arg0, %c0_i32, %c0_i32_0 : i32, i32, i32
  }
  func.func @transform_2(%arg0: i32) -> (i32, i32, i32) {
    %c0_i32 = arith.constant 0 : i32
    %c0_i32_0 = arith.constant 0 : i32
    %c0_i32_1 = arith.constant 0 : i32
    return %arg0, %c0_i32, %c0_i32_0 : i32, i32, i32
  }
  func.func @transform_3(%arg0: i32) -> (i32, i32, i32) {
    %c0_i32 = arith.constant 0 : i32
    %c0_i32_0 = arith.constant 0 : i32
    %c0_i32_1 = arith.constant 0 : i32
    return %arg0, %c0_i32, %c0_i32_0 : i32, i32, i32
  }
  func.func @transform_4(%arg0: i32) -> (i32, i32) {
    %c0_i32 = arith.constant 0 : i32
    %c0_i32_0 = arith.constant 0 : i32
    return %arg0, %c0_i32 : i32, i32
  }
  func.func @transform_5(%arg0: i32) -> (i32, i32, i32) {
    %c0_i32 = arith.constant 0 : i32
    %c0_i32_0 = arith.constant 0 : i32
    %c0_i32_1 = arith.constant 0 : i32
    %c0_i32_2 = arith.constant 0 : i32
    return %c0_i32, %c0_i32_0, %c0_i32_1 : i32, i32, i32
  }
  func.func @transform_6(%arg0: i32) -> (i32, i32, i32) {
    %c0_i32 = arith.constant 0 : i32
    %c0_i32_0 = arith.constant 0 : i32
    %c0_i32_1 = arith.constant 0 : i32
    %c0_i32_2 = arith.constant 0 : i32
    return %c0_i32, %c0_i32_0, %c0_i32_1 : i32, i32, i32
  }
  func.func @transform_7(%arg0: i32) -> (i32, i32) {
    %c0_i32 = arith.constant 0 : i32
    %c0_i32_0 = arith.constant 0 : i32
    return %arg0, %c0_i32 : i32, i32
  }
}

</mosaic_0001>

<llo_original>
// kernel: tpu_custom_call.1
$region0: #{tpu_custom_call.1}
  #allocation0 [shape = 'u32[]', space=smem, size = 0x4, offset = 0x4, fixed_abs, tag = 'smem constant byte address 0x4 - core index']
  #allocation1 [shape = 'u32[144,128]{1,0:T(1,128)}', space=vmem, size = 0x12000, scoped, tag = 'internal scratch']
  %s0 = inlined_call_operand.vmem [shape: f32[6,8,16], index: 0, kind: input, shape index: {}]
  %s1 = inlined_call_operand.hbm [shape: f32[6,8,16], index: 1, kind: input, shape index: {}]
  %s2 = inlined_call_operand.hbm [shape: f32[6,16,32], index: 2, kind: input, shape index: {}]
  %s3 = inlined_call_operand.hbm [shape: f32[6,16,32], index: 3, kind: input, shape index: {}]
  %s4 = inlined_call_operand.vmem [shape: f32[48,32], index: 4, kind: input, shape index: {}]
  %s5 = inlined_call_operand.hbm [shape: f32[9,32,32], index: 5, kind: input, shape index: {}]
  %s6 = inlined_call_operand.vmem [shape: f32[3,1,32], index: 6, kind: input, shape index: {}]
  %s7 = inlined_call_operand.vmem [shape: f32[48,32], index: 7, kind: output, shape index: {}]
  %s8 = sld [smem:[#allocation0]]
  $region77: #{tpu_custom_call.1} parent=0
    _
  %s10 = ssub.s32 1, %s8
  %s11 = scalar_select 0, %s10, %s8
  $region1: #{tpu_custom_call.1} parent=0
    #allocation2 [shape = 'u8[24576]{0}', space=vmem, size = 0x6000, scoped, tag = 'input window, operand 1']
    #allocation3 [shape = 's32[2]{0}', space=sflag, size = 0x8, scoped, tag = 'scoped memory for tpu_custom_call.1']
    #allocation4 [shape = 'u8[49152]{0}', space=vmem, size = 0xc000, scoped, tag = 'input window, operand 2']
    #allocation5 [shape = 's32[2]{0}', space=sflag, size = 0x8, scoped, tag = 'scoped memory for tpu_custom_call.1']
    #allocation6 [shape = 'u8[49152]{0}', space=vmem, size = 0xc000, scoped, tag = 'input window, operand 3']
    #allocation7 [shape = 'u8[147456]{0}', space=vmem, size = 0x24000, scoped, tag = 'input window, operand 5, single buffered']
    #allocation8 [shape = 's32[1]{0}', space=sflag, size = 0x4, scoped, tag = 'scoped memory for tpu_custom_call.1']
    %12 = vsyncpa [#allocation3], 0
    %s13 = scalar_lea.sflag [#allocation3], 1
    %14 = vsyncpa %s13, 0
    %15 = vsyncpa [#allocation5], 0
    %s16 = scalar_lea.sflag [#allocation5], 1
    %17 = vsyncpa %s16, 0
    %18 = vsyncpa [#allocation8], 0
    loop: start=0, step=1, limit=4
    $region2: #{tpu_custom_call.1} parent=1 // loop_pre_header
      _
    $region3: #{tpu_custom_call.1} parent=1 // loop_header
      %s20 = sphi 0, %s24
      %p21 = scmp.ge.s32.totalorder %s20, 4
      %s30 = sphi 0, %s32
      %s33 = sphi 0, %s30
      %s34 = sphi 0, %s33
      %s50 = sphi 0, %s34
      %s56 = sphi 0, %s58
      %s59 = sphi 0, %s56
      %s60 = sphi 0, %s59
      %s76 = sphi 0, %s60
      %s82 = sphi 0, %s84
      %s85 = sphi 0, %s82
      %s86 = sphi 0, %s85
      %s102 = sphi 0, %s86
      %s108 = sphi 0, %s110
      %s111 = sphi 0, %s108
      %s112 = sphi 0, %s111
      %s128 = sphi 0, %s112
      %s134 = sphi 0, %s136
      %s137 = sphi 0, %s134
      %s138 = sphi 0, %s137
      %s154 = sphi 0, %s138
      %s158 = sphi 0, %s158
      %s160 = sphi 0, %s158
      %s161 = sphi 0, %s160
      %s175 = sphi 0, %s161
      %s179 = sphi 0, %s179
      %s181 = sphi 0, %s179
      %s182 = sphi 0, %s181
      %s196 = sphi 0, %s182
      %s202 = sphi 0, %s204
      %s205 = sphi 0, %s202
      %s206 = sphi 0, %s205
      %s222 = sphi 0, %s206
    $region4: #{tpu_custom_call.1} parent=1 // loop_header_branch
      %23 = sbr.rel (%p21) target = $region8
    $region5: #{tpu_custom_call.1} parent=1 // loop_body
      %s25 = ssub.s32 %s20, 1
      %s26 = ssub.s32 %s20, 2
      %s27 = sadd.s32 %s20, 1
      %s28 = ssub.s32 %s20, %s27
      %p29 = scmp.eq.s32.totalorder %s28, 0
      %s31 = sadd.s32 %s30, 1
      %s32 = scalar_select %p29, %s30, %s31
      %p35 = pneg %p29
      %p36 = scmp.eq.s32.totalorder %s20, 1
      %p37 = por %p35, %p36
      %p38 = scmp.ne.s32.totalorder %s30, %s33
      %p39 = scmp.eq.s32.totalorder %s20, 0
      %p40 = por %p38, %p39
      %p41 = scmp.ne.s32.totalorder %s30, %s33
      %p42 = scmp.eq.s32.totalorder %s25, 1
      %p43 = por %p41, %p42
      %p44 = scmp.ne.s32.totalorder %s33, %s34
      %p45 = scmp.eq.s32.totalorder %s25, 0
      %p46 = por %p44, %p45
      %p47 = scmp.ne.s32.totalorder %s33, %s34
      %p48 = scmp.eq.s32.totalorder %s26, 1
      %p49 = por %p47, %p48
      %p51 = scmp.ne.s32.totalorder %s34, %s50
      %p52 = scmp.eq.s32.totalorder %s26, 0
      %p53 = por %p51, %p52
      %s54 = ssub.s32 %s20, %s27
      %p55 = scmp.eq.s32.totalorder %s54, 0
      %s57 = sadd.s32 %s56, 1
      %s58 = scalar_select %p55, %s56, %s57
      %p61 = pneg %p55
      %p62 = scmp.eq.s32.totalorder %s20, 1
      %p63 = por %p61, %p62
      %p64 = scmp.ne.s32.totalorder %s56, %s59
      %p65 = scmp.eq.s32.totalorder %s20, 0
      %p66 = por %p64, %p65
      %p67 = scmp.ne.s32.totalorder %s56, %s59
      %p68 = scmp.eq.s32.totalorder %s25, 1
      %p69 = por %p67, %p68
      %p70 = scmp.ne.s32.totalorder %s59, %s60
      %p71 = scmp.eq.s32.totalorder %s25, 0
      %p72 = por %p70, %p71
      %p73 = scmp.ne.s32.totalorder %s59, %s60
      %p74 = scmp.eq.s32.totalorder %s26, 1
      %p75 = por %p73, %p74
      %p77 = scmp.ne.s32.totalorder %s60, %s76
      %p78 = scmp.eq.s32.totalorder %s26, 0
      %p79 = por %p77, %p78
      %s80 = ssub.s32 %s20, %s27
      %p81 = scmp.eq.s32.totalorder %s80, 0
      %s83 = sadd.s32 %s82, 1
      %s84 = scalar_select %p81, %s82, %s83
      %p87 = pneg %p81
      %p88 = scmp.eq.s32.totalorder %s20, 1
      %p89 = por %p87, %p88
      %p90 = scmp.ne.s32.totalorder %s82, %s85
      %p91 = scmp.eq.s32.totalorder %s20, 0
      %p92 = por %p90, %p91
      %p93 = scmp.ne.s32.totalorder %s82, %s85
      %p94 = scmp.eq.s32.totalorder %s25, 1
      %p95 = por %p93, %p94
      %p96 = scmp.ne.s32.totalorder %s85, %s86
      %p97 = scmp.eq.s32.totalorder %s25, 0
      %p98 = por %p96, %p97
      %p99 = scmp.ne.s32.totalorder %s85, %s86
      %p100 = scmp.eq.s32.totalorder %s26, 1
      %p101 = por %p99, %p100
      %p103 = scmp.ne.s32.totalorder %s86, %s102
      %p104 = scmp.eq.s32.totalorder %s26, 0
      %p105 = por %p103, %p104
      %s106 = ssub.s32 %s20, %s27
      %p107 = scmp.eq.s32.totalorder %s106, 0
      %s109 = sadd.s32 %s108, 1
      %s110 = scalar_select %p107, %s108, %s109
      %p113 = pneg %p107
      %p114 = scmp.eq.s32.totalorder %s20, 1
      %p115 = por %p113, %p114
      %p116 = scmp.ne.s32.totalorder %s108, %s111
      %p117 = scmp.eq.s32.totalorder %s20, 0
      %p118 = por %p116, %p117
      %p119 = scmp.ne.s32.totalorder %s108, %s111
      %p120 = scmp.eq.s32.totalorder %s25, 1
      %p121 = por %p119, %p120
      %p122 = scmp.ne.s32.totalorder %s111, %s112
      %p123 = scmp.eq.s32.totalorder %s25, 0
      %p124 = por %p122, %p123
      %p125 = scmp.ne.s32.totalorder %s111, %s112
      %p126 = scmp.eq.s32.totalorder %s26, 1
      %p127 = por %p125, %p126
      %p129 = scmp.ne.s32.totalorder %s112, %s128
      %p130 = scmp.eq.s32.totalorder %s26, 0
      %p131 = por %p129, %p130
      %s132 = ssub.s32 %s20, %s27
      %p133 = scmp.eq.s32.totalorder %s132, 0
      %s135 = sadd.s32 %s134, 1
      %s136 = scalar_select %p133, %s134, %s135
      %p139 = pneg %p133
      %p140 = scmp.eq.s32.totalorder %s20, 1
      %p141 = por %p139, %p140
      %p142 = scmp.ne.s32.totalorder %s134, %s137
      %p143 = scmp.eq.s32.totalorder %s20, 0
      %p144 = por %p142, %p143
      %p145 = scmp.ne.s32.totalorder %s134, %s137
      %p146 = scmp.eq.s32.totalorder %s25, 1
      %p147 = por %p145, %p146
      %p148 = scmp.ne.s32.totalorder %s137, %s138
      %p149 = scmp.eq.s32.totalorder %s25, 0
      %p150 = por %p148, %p149
      %p151 = scmp.ne.s32.totalorder %s137, %s138
      %p152 = scmp.eq.s32.totalorder %s26, 1
      %p153 = por %p151, %p152
      %p155 = scmp.ne.s32.totalorder %s138, %s154
      %p156 = scmp.eq.s32.totalorder %s26, 0
      %p157 = por %p155, %p156
      %s159 = sadd.s32 %s158, 1
      %p162 = scmp.eq.s32.totalorder %s20, 1
      %p163 = scmp.ne.s32.totalorder %s158, %s160
      %p164 = scmp.eq.s32.totalorder %s20, 0
      %p165 = por %p163, %p164
      %p166 = scmp.ne.s32.totalorder %s158, %s160
      %p167 = scmp.eq.s32.totalorder %s25, 1
      %p168 = por %p166, %p167
      %p169 = scmp.ne.s32.totalorder %s160, %s161
      %p170 = scmp.eq.s32.totalorder %s25, 0
      %p171 = por %p169, %p170
      %p172 = scmp.ne.s32.totalorder %s160, %s161
      %p173 = scmp.eq.s32.totalorder %s26, 1
      %p174 = por %p172, %p173
      %p176 = scmp.ne.s32.totalorder %s161, %s175
      %p177 = scmp.eq.s32.totalorder %s26, 0
      %p178 = por %p176, %p177
      %s180 = sadd.s32 %s179, 1
      %p183 = scmp.eq.s32.totalorder %s20, 1
      %p184 = scmp.ne.s32.totalorder %s179, %s181
      %p185 = scmp.eq.s32.totalorder %s20, 0
      %p186 = por %p184, %p185
      %p187 = scmp.ne.s32.totalorder %s179, %s181
      %p188 = scmp.eq.s32.totalorder %s25, 1
      %p189 = por %p187, %p188
      %p190 = scmp.ne.s32.totalorder %s181, %s182
      %p191 = scmp.eq.s32.totalorder %s25, 0
      %p192 = por %p190, %p191
      %p193 = scmp.ne.s32.totalorder %s181, %s182
      %p194 = scmp.eq.s32.totalorder %s26, 1
      %p195 = por %p193, %p194
      %p197 = scmp.ne.s32.totalorder %s182, %s196
      %p198 = scmp.eq.s32.totalorder %s26, 0
      %p199 = por %p197, %p198
      %s200 = ssub.s32 %s20, %s27
      %p201 = scmp.eq.s32.totalorder %s200, 0
      %s203 = sadd.s32 %s202, 1
      %s204 = scalar_select %p201, %s202, %s203
      %p207 = pneg %p201
      %p208 = scmp.eq.s32.totalorder %s20, 1
      %p209 = por %p207, %p208
      %p210 = scmp.ne.s32.totalorder %s202, %s205
      %p211 = scmp.eq.s32.totalorder %s20, 0
      %p212 = por %p210, %p211
      %p213 = scmp.ne.s32.totalorder %s202, %s205
      %p214 = scmp.eq.s32.totalorder %s25, 1
      %p215 = por %p213, %p214
      %p216 = scmp.ne.s32.totalorder %s205, %s206
      %p217 = scmp.eq.s32.totalorder %s25, 0
      %p218 = por %p216, %p217
      %p219 = scmp.ne.s32.totalorder %s205, %s206
      %p220 = scmp.eq.s32.totalorder %s26, 1
      %p221 = por %p219, %p220
      %p223 = scmp.ne.s32.totalorder %s206, %s222
      %p224 = scmp.eq.s32.totalorder %s26, 0
      %p225 = por %p223, %p224
      %p226 = scmp.le.s32.totalorder 1, %s20
      %p227 = scmp.lt.s32.totalorder %s20, 3
      %p228 = pnand %p226, %p227
      %p229 = pneg %p228
      // Predicated region
      $region9: #{tpu_custom_call.1} parent=5 // pred_check
        _
      $region10: #{tpu_custom_call.1} parent=5 // pred_check_branch
        %231 = sbr.rel (%p228) target = $region12
      $region11: #{tpu_custom_call.1} parent=5 // pred_region
        %s232 = ssub.s32 %s20, 1
        // Predicated region
        $region13: #{tpu_custom_call.1} parent=11 // pred_check
          %p233 = pneg %p171
        $region14: #{tpu_custom_call.1} parent=11 // pred_check_branch
          %235 = sbr.rel (%p233) target = $region16
        $region15: #{tpu_custom_call.1} parent=11 // pred_region
          %s237 = ssub.s32 4608, 4608
          %238 = vsyncadd [#allocation8], %s237
          %s239 = sshll.u32 [#allocation7], 4
          %s240 = int_to_ptr.vmem [resolvable:$true] %s239
          %245 = dma.hbm_to_vmem [thread:$0]  %s5, 4608, %s240, [#allocation8], 128, 128, 8
        $region16: #{tpu_custom_call.1} parent=11 // pred_fallthru
          _
        // Predicated region
        $region17: #{tpu_custom_call.1} parent=11 // pred_check
          %p246 = pneg %p192
        $region18: #{tpu_custom_call.1} parent=11 // pred_check_branch
          %248 = sbr.rel (%p246) target = $region20
        $region19: #{tpu_custom_call.1} parent=11 // pred_region
          _
        $region20: #{tpu_custom_call.1} parent=11 // pred_fallthru
          _
      $region12: #{tpu_custom_call.1} parent=5 // pred_fallthru
        _
      %p249 = scmp.lt.s32.totalorder %s20, 2
      // Predicated region
      $region21: #{tpu_custom_call.1} parent=5 // pred_check
        %p250 = pneg %p249
      $region22: #{tpu_custom_call.1} parent=5 // pred_check_branch
        %252 = sbr.rel (%p250) target = $region24
      $region23: #{tpu_custom_call.1} parent=5 // pred_region
        // Predicated region
        $region25: #{tpu_custom_call.1} parent=23 // pred_check
          %p253 = pneg %p40
        $region26: #{tpu_custom_call.1} parent=23 // pred_check_branch
          %255 = sbr.rel (%p253) target = $region28
        $region27: #{tpu_custom_call.1} parent=23 // pred_region
          %s256 = smul.u32 3, %s20
          %p257 = scmp.lt.s32.totalorder %s256, 5
          %s258 = scalar_select %p257, %s256, 5
          %s259 = smul.addr %s258, 8
          %s260 = scalar_lea.vmem %s0, %s259
          %s261 = smul.u32 3, %s20
        $region28: #{tpu_custom_call.1} parent=23 // pred_fallthru
          _
        // Predicated region
        $region29: #{tpu_custom_call.1} parent=23 // pred_check
          %p262 = pneg %p66
        $region30: #{tpu_custom_call.1} parent=23 // pred_check_branch
          %264 = sbr.rel (%p262) target = $region32
        $region31: #{tpu_custom_call.1} parent=23 // pred_region
          %s265 = sand.u32 %s56, 1
          %s266 = scalar_lea.sflag [#allocation3], %s265
          %s267 = sand.u32 %s56, 1
          %s268 = smul.addr %s267, 24
          %s269 = scalar_lea.vmem [#allocation2], %s268
          %s270 = smul.u32 3, %s20
          %s272 = ssub.s32 384, 384
          %273 = vsyncadd %s266, %s272
          %s274 = smul.addr %s270, 128
          %s275 = scalar_lea.hbm %s1, %s274
          %s276 = sshll.u32 %s269, 4
          %s277 = int_to_ptr.vmem [resolvable:$true] %s276
          %282 = dma.hbm_to_vmem [thread:$0]  %s275, 384, %s277, %s266, 128, 128, 8
        $region32: #{tpu_custom_call.1} parent=23 // pred_fallthru
          _
        // Predicated region
        $region33: #{tpu_custom_call.1} parent=23 // pred_check
          %p283 = pneg %p92
        $region34: #{tpu_custom_call.1} parent=23 // pred_check_branch
          %285 = sbr.rel (%p283) target = $region36
        $region35: #{tpu_custom_call.1} parent=23 // pred_region
          %s286 = sand.u32 %s20, 1
          %s287 = scalar_lea.sflag [#allocation5], %s286
          %s288 = sand.u32 %s82, 1
          %s289 = smul.addr %s288, 48
          %s290 = scalar_lea.vmem [#allocation4], %s289
          %s291 = smul.u32 3, %s20
          %s293 = ssub.s32 768, 768
          %294 = vsyncadd %s287, %s293
          %s295 = smul.addr %s291, 2
          %s296 = smul.addr %s295, 128
          %s297 = scalar_lea.hbm %s2, %s296
          %s298 = sshll.u32 %s290, 4
          %s299 = int_to_ptr.vmem [resolvable:$true] %s298
          %304 = dma.hbm_to_vmem [thread:$0]  %s297, 768, %s299, %s287, 128, 128, 8
        $region36: #{tpu_custom_call.1} parent=23 // pred_fallthru
          _
        // Predicated region
        $region37: #{tpu_custom_call.1} parent=23 // pred_check
          %p305 = pneg %p118
        $region38: #{tpu_custom_call.1} parent=23 // pred_check_branch
          %307 = sbr.rel (%p305) target = $region40
        $region39: #{tpu_custom_call.1} parent=23 // pred_region
          %s308 = sand.u32 %s20, 1
          %s309 = scalar_lea.sflag [#allocation5], %s308
          %s310 = sand.u32 %s108, 1
          %s311 = smul.addr %s310, 48
          %s312 = scalar_lea.vmem [#allocation6], %s311
          %s313 = smul.u32 3, %s20
          %s315 = ssub.s32 768, 768
          %316 = vsyncadd %s309, %s315
          %s317 = smul.addr %s313, 2
          %s318 = smul.addr %s317, 128
          %s319 = scalar_lea.hbm %s3, %s318
          %s320 = sshll.u32 %s312, 4
          %s321 = int_to_ptr.vmem [resolvable:$true] %s320
          %326 = dma.hbm_to_vmem [thread:$0]  %s319, 768, %s321, %s309, 128, 128, 8
        $region40: #{tpu_custom_call.1} parent=23 // pred_fallthru
          _
        // Predicated region
        $region41: #{tpu_custom_call.1} parent=23 // pred_check
          %p327 = pneg %p144
        $region42: #{tpu_custom_call.1} parent=23 // pred_check_branch
          %329 = sbr.rel (%p327) target = $region44
        $region43: #{tpu_custom_call.1} parent=23 // pred_region
          %s330 = smul.u32 3, %s20
          %p331 = scmp.lt.s32.totalorder %s330, 5
          %s332 = scalar_select %p331, %s330, 5
          %s333 = smul.addr %s332, 8
          %s334 = scalar_lea.vmem %s4, %s333
          %s335 = smul.u32 3, %s20
        $region44: #{tpu_custom_call.1} parent=23 // pred_fallthru
          _
      $region24: #{tpu_custom_call.1} parent=5 // pred_fallthru
        _
      %p336 = scmp.le.s32.totalorder 1, %s20
      %p337 = scmp.lt.s32.totalorder %s20, 3
      %p338 = pnand %p336, %p337
      %p339 = pneg %p338
      // Predicated region
      $region45: #{tpu_custom_call.1} parent=5 // pred_check
        _
      $region46: #{tpu_custom_call.1} parent=5 // pred_check_branch
        %341 = sbr.rel (%p338) target = $region48
      $region47: #{tpu_custom_call.1} parent=5 // pred_region
        %s342 = ssub.s32 %s20, 1
        %s343 = sand.u32 %s59, 1
        %s344 = scalar_lea.sflag [#allocation3], %s343
        %s345 = sand.u32 %s59, 1
        %s346 = smul.addr %s345, 24
        %s347 = scalar_lea.vmem [#allocation2], %s346
        // Predicated region
        $region49: #{tpu_custom_call.1} parent=47 // pred_check
          %p348 = pneg %p72
        $region50: #{tpu_custom_call.1} parent=47 // pred_check_branch
          %350 = sbr.rel (%p348) target = $region52
        $region51: #{tpu_custom_call.1} parent=47 // pred_region
          %351 = dma.done %s344, 384
        $region52: #{tpu_custom_call.1} parent=47 // pred_fallthru
          _
        %s352 = sand.u32 %s25, 1
        %s353 = scalar_lea.sflag [#allocation5], %s352
        %s354 = sand.u32 %s85, 1
        %s355 = smul.addr %s354, 48
        %s356 = scalar_lea.vmem [#allocation4], %s355
        // Predicated region
        $region53: #{tpu_custom_call.1} parent=47 // pred_check
          %p357 = pneg %p98
        $region54: #{tpu_custom_call.1} parent=47 // pred_check_branch
          %359 = sbr.rel (%p357) target = $region56
        $region55: #{tpu_custom_call.1} parent=47 // pred_region
          %360 = dma.done %s353, 768
        $region56: #{tpu_custom_call.1} parent=47 // pred_fallthru
          _
        %s361 = sand.u32 %s25, 1
        %s362 = scalar_lea.sflag [#allocation5], %s361
        %s363 = sand.u32 %s111, 1
        %s364 = smul.addr %s363, 48
        %s365 = scalar_lea.vmem [#allocation6], %s364
        // Predicated region
        $region57: #{tpu_custom_call.1} parent=47 // pred_check
          %p366 = pneg %p124
        $region58: #{tpu_custom_call.1} parent=47 // pred_check_branch
          %368 = sbr.rel (%p366) target = $region60
        $region59: #{tpu_custom_call.1} parent=47 // pred_region
          %369 = dma.done %s362, 768
        $region60: #{tpu_custom_call.1} parent=47 // pred_fallthru
          _
        // Predicated region
        $region61: #{tpu_custom_call.1} parent=47 // pred_check
          %p370 = pneg %p171
        $region62: #{tpu_custom_call.1} parent=47 // pred_check_branch
          %372 = sbr.rel (%p370) target = $region64
        $region63: #{tpu_custom_call.1} parent=47 // pred_region
          %373 = dma.done [#allocation8], 4608
        $region64: #{tpu_custom_call.1} parent=47 // pred_fallthru
          _
        %s374 = smul.u32 3, %s25
        %p375 = scmp.lt.s32.totalorder %s374, 5
        %s376 = scalar_select %p375, %s374, 5
        %s377 = smul.addr %s376, 8
        %s378 = scalar_lea.vmem %s0, %s377
        %p379 = pneg %p46
        %p380 = pneg %p43
        %s381 = sand.u32 %s59, 1
        %s382 = scalar_lea.sflag [#allocation3], %s381
        %s383 = sand.u32 %s59, 1
        %s384 = smul.addr %s383, 24
        %s385 = scalar_lea.vmem [#allocation2], %s384
        %p386 = pneg %p72
        %p387 = pneg %p69
        %s388 = sand.u32 %s25, 1
        %s389 = scalar_lea.sflag [#allocation5], %s388
        %s390 = sand.u32 %s85, 1
        %s391 = smul.addr %s390, 48
        %s392 = scalar_lea.vmem [#allocation4], %s391
        %p393 = pneg %p98
        %p394 = pneg %p95
        %s395 = sand.u32 %s25, 1
        %s396 = scalar_lea.sflag [#allocation5], %s395
        %s397 = sand.u32 %s111, 1
        %s398 = smul.addr %s397, 48
        %s399 = scalar_lea.vmem [#allocation6], %s398
        %p400 = pneg %p124
        %p401 = pneg %p121
        %s402 = smul.u32 3, %s25
        %p403 = scmp.lt.s32.totalorder %s402, 5
        %s404 = scalar_select %p403, %s402, 5
        %s405 = smul.addr %s404, 8
        %s406 = scalar_lea.vmem %s4, %s405
        %p407 = pneg %p150
        %p408 = pneg %p147
        %p409 = pneg %p171
        %p410 = pneg %p168
        %p411 = pneg %p192
        %p412 = pneg %p189
        %p413 = pneg %p218
        %p414 = pneg %p215
        %s415 = smul.u32 3, %s25
        %p416 = scmp.lt.s32.totalorder %s415, 5
        %s417 = scalar_select %p416, %s415, 5
        %s418 = smul.addr %s417, 8
        %s419 = scalar_lea.vmem %s7, %s418
        %s420 = smul.u32 3, %s25
        %p421 = scmp.lt.s32.totalorder %s420, 5
        %s422 = scalar_select %p421, %s420, 5
        %s423 = smul.addr %s422, 8
        %s424 = scalar_lea.vmem %s0, %s423
        %s425 = smul.u32 3, %s25
        %s426 = smul.u32 3, %s25
        %s427 = smul.u32 3, %s25
        %s428 = smul.u32 3, %s25
        %s429 = smul.u32 3, %s25
        %p430 = scmp.lt.s32.totalorder %s429, 5
        %s431 = scalar_select %p430, %s429, 5
        %s432 = smul.addr %s431, 8
        %s433 = scalar_lea.vmem %s4, %s432
        %s434 = smul.u32 3, %s25
        %s435 = smul.u32 3, %s25
        %p436 = scmp.lt.s32.totalorder %s435, 5
        %s437 = scalar_select %p436, %s435, 5
        %s438 = smul.addr %s437, 8
        %s439 = scalar_lea.vmem %s7, %s438
        %s440 = smul.u32 3, %s25
        %v441 = vld [vmem:[%s424] sm:$0xff]
        %v442 = vld [vmem:[%s424 + $0x8] sm:$0xff]
        %v443 = vld [vmem:[%s424 + $0x10] sm:$0xff]
        %v444 = vld [vmem:[%s356] sm:$0xff]
        %v445 = vld [vmem:[%s356 + $0x8] sm:$0xff]
        %v446 = vld [vmem:[%s356 + $0x10] sm:$0xff]
        %v447 = vld [vmem:[%s356 + $0x18] sm:$0xff]
        %v448 = vld [vmem:[%s356 + $0x20] sm:$0xff]
        %v449 = vld [vmem:[%s356 + $0x28] sm:$0xff]
        %vm450 = vcmask 130048
        %v452 = vsel %vm450, %v441, 0
        %454 = vmatprep.subr.mxu0 0.0
        %455 = vmatpush1.msra.mxu0 0.0
        %456 = vmatprep.subr.mxu0 0.0
        %457 = vmatpush1.msra.mxu0 0.0
        %458 = vmatprep.subr.mxu0 0.0
        %459 = vmatpush1.msra.mxu0 0.0
        %460 = vmatprep.subr.mxu0 0.0
        %461 = vmatpush1.msra.mxu0 0.0
        %462 = vmatprep.subr.mxu0 0.0
        %463 = vmatpush1.msra.mxu0 0.0
        %464 = vmatprep.subr.mxu0 0.0
        %465 = vmatpush1.msra.mxu0 0.0
        %466 = vmatprep.subr.mxu0 0.0
        %467 = vmatpush1.msra.mxu0 0.0
        %468 = vmatprep.subr.mxu0 0.0
        %469 = vmatpush1.msra.mxu0 0.0
        %470 = vmatprep.subr.mxu0 0.0
        %471 = vmatpush1.msra.mxu0 0.0
        %472 = vmatprep.subr.mxu0 0.0
        %473 = vmatpush1.msra.mxu0 0.0
        %474 = vmatprep.subr.mxu0 0.0
        %475 = vmatpush1.msra.mxu0 0.0
        %476 = vmatprep.subr.mxu0 0.0
        %477 = vmatpush1.msra.mxu0 0.0
        %478 = vmatprep.subr.mxu0 0.0
        %479 = vmatpush1.msra.mxu0 0.0
        %480 = vmatprep.subr.mxu0 0.0
        %481 = vmatpush1.msra.mxu0 0.0
        %482 = vmatprep.subr.mxu0 0.0
        %483 = vmatpush1.msra.mxu0 %v445
        %484 = vmatprep.subr.mxu0 0.0
        %485 = vmatpush1.msra.mxu0 %v444
        %486 = vmatprep.subr.mxu0 0.0
        %487 = vmatpush2.msra.mxu0 0.0
        %488 = vmatprep.subr.mxu0 0.0
        %489 = vmatpush2.msra.mxu0 0.0
        %490 = vmatprep.subr.mxu0 0.0
        %491 = vmatpush2.msra.mxu0 0.0
        %492 = vmatprep.subr.mxu0 0.0
        %493 = vmatpush2.msra.mxu0 0.0
        %494 = vmatprep.subr.mxu0 0.0
        %495 = vmatpush2.msra.mxu0 0.0
        %496 = vmatprep.subr.mxu0 0.0
        %497 = vmatpush2.msra.mxu0 0.0
        %498 = vmatprep.subr.mxu0 0.0
        %499 = vmatpush2.msra.mxu0 0.0
        %500 = vmatprep.subr.mxu0 0.0
        %501 = vmatpush2.msra.mxu0 0.0
        %502 = vmatprep.subr.mxu0 0.0
        %503 = vmatpush2.msra.mxu0 0.0
        %504 = vmatprep.subr.mxu0 0.0
        %505 = vmatpush2.msra.mxu0 0.0
        %506 = vmatprep.subr.mxu0 0.0
        %507 = vmatpush2.msra.mxu0 0.0
        %508 = vmatprep.subr.mxu0 0.0
        %509 = vmatpush2.msra.mxu0 0.0
        %510 = vmatprep.subr.mxu0 0.0
        %511 = vmatpush2.msra.mxu0 0.0
        %512 = vmatprep.subr.mxu0 0.0
        %513 = vmatpush2.msra.mxu0 0.0
        %514 = vmatprep.subr.mxu0 0.0
        %515 = vmatpush2.msra.mxu0 0.0
        %516 = vmatprep.subr.mxu0 0.0
        %517 = vmatpush2.msra.mxu0 0.0
        %518 = vmatprep.mubr.f32.mxu0 0.0
        %519 = vmatmul.mubr.f32.gmra.mxu0 %v452
        %v520 = vpop.f32.mrf.mxu0
        %v521 = vadd.f32 0.0, %v520
        %v522 = vpop.f32.mrf.mxu0
        %523 = vdwg.mxu0
        %v525 = vsel %vm450, %v442, 0
        %527 = vmatprep.subr.mxu0 0.0
        %528 = vmatpush1.msra.mxu0 0.0
        %529 = vmatprep.subr.mxu0 0.0
        %530 = vmatpush1.msra.mxu0 0.0
        %531 = vmatprep.subr.mxu0 0.0
        %532 = vmatpush1.msra.mxu0 0.0
        %533 = vmatprep.subr.mxu0 0.0
        %534 = vmatpush1.msra.mxu0 0.0
        %535 = vmatprep.subr.mxu0 0.0
        %536 = vmatpush1.msra.mxu0 0.0
        %537 = vmatprep.subr.mxu0 0.0
        %538 = vmatpush1.msra.mxu0 0.0
        %539 = vmatprep.subr.mxu0 0.0
        %540 = vmatpush1.msra.mxu0 0.0
        %541 = vmatprep.subr.mxu0 0.0
        %542 = vmatpush1.msra.mxu0 0.0
        %543 = vmatprep.subr.mxu0 0.0
        %544 = vmatpush1.msra.mxu0 0.0
        %545 = vmatprep.subr.mxu0 0.0
        %546 = vmatpush1.msra.mxu0 0.0
        %547 = vmatprep.subr.mxu0 0.0
        %548 = vmatpush1.msra.mxu0 0.0
        %549 = vmatprep.subr.mxu0 0.0
        %550 = vmatpush1.msra.mxu0 0.0
        %551 = vmatprep.subr.mxu0 0.0
        %552 = vmatpush1.msra.mxu0 0.0
        %553 = vmatprep.subr.mxu0 0.0
        %554 = vmatpush1.msra.mxu0 0.0
        %555 = vmatprep.subr.mxu0 0.0
        %556 = vmatpush1.msra.mxu0 %v447
        %557 = vmatprep.subr.mxu0 0.0
        %558 = vmatpush1.msra.mxu0 %v446
        %559 = vmatprep.subr.mxu0 0.0
        %560 = vmatpush2.msra.mxu0 0.0
        %561 = vmatprep.subr.mxu0 0.0
        %562 = vmatpush2.msra.mxu0 0.0
        %563 = vmatprep.subr.mxu0 0.0
        %564 = vmatpush2.msra.mxu0 0.0
        %565 = vmatprep.subr.mxu0 0.0
        %566 = vmatpush2.msra.mxu0 0.0
        %567 = vmatprep.subr.mxu0 0.0
        %568 = vmatpush2.msra.mxu0 0.0
        %569 = vmatprep.subr.mxu0 0.0
        %570 = vmatpush2.msra.mxu0 0.0
        %571 = vmatprep.subr.mxu0 0.0
        %572 = vmatpush2.msra.mxu0 0.0
        %573 = vmatprep.subr.mxu0 0.0
        %574 = vmatpush2.msra.mxu0 0.0
        %575 = vmatprep.subr.mxu0 0.0
        %576 = vmatpush2.msra.mxu0 0.0
        %577 = vmatprep.subr.mxu0 0.0
        %578 = vmatpush2.msra.mxu0 0.0
        %579 = vmatprep.subr.mxu0 0.0
        %580 = vmatpush2.msra.mxu0 0.0
        %581 = vmatprep.subr.mxu0 0.0
        %582 = vmatpush2.msra.mxu0 0.0
        %583 = vmatprep.subr.mxu0 0.0
        %584 = vmatpush2.msra.mxu0 0.0
        %585 = vmatprep.subr.mxu0 0.0
        %586 = vmatpush2.msra.mxu0 0.0
        %587 = vmatprep.subr.mxu0 0.0
        %588 = vmatpush2.msra.mxu0 0.0
        %589 = vmatprep.subr.mxu0 0.0
        %590 = vmatpush2.msra.mxu0 0.0
        %591 = vmatprep.mubr.f32.mxu0 0.0
        %592 = vmatmul.mubr.f32.gmra.mxu0 %v525
        %v593 = vpop.f32.mrf.mxu0
        %v594 = vadd.f32 0.0, %v593
        %v595 = vpop.f32.mrf.mxu0
        %596 = vdwg.mxu0
        %v598 = vsel %vm450, %v443, 0
        %600 = vmatprep.subr.mxu0 0.0
        %601 = vmatpush1.msra.mxu0 0.0
        %602 = vmatprep.subr.mxu0 0.0
        %603 = vmatpush1.msra.mxu0 0.0
        %604 = vmatprep.subr.mxu0 0.0
        %605 = vmatpush1.msra.mxu0 0.0
        %606 = vmatprep.subr.mxu0 0.0
        %607 = vmatpush1.msra.mxu0 0.0
        %608 = vmatprep.subr.mxu0 0.0
        %609 = vmatpush1.msra.mxu0 0.0
        %610 = vmatprep.subr.mxu0 0.0
        %611 = vmatpush1.msra.mxu0 0.0
        %612 = vmatprep.subr.mxu0 0.0
        %613 = vmatpush1.msra.mxu0 0.0
        %614 = vmatprep.subr.mxu0 0.0
        %615 = vmatpush1.msra.mxu0 0.0
        %616 = vmatprep.subr.mxu0 0.0
        %617 = vmatpush1.msra.mxu0 0.0
        %618 = vmatprep.subr.mxu0 0.0
        %619 = vmatpush1.msra.mxu0 0.0
        %620 = vmatprep.subr.mxu0 0.0
        %621 = vmatpush1.msra.mxu0 0.0
        %622 = vmatprep.subr.mxu0 0.0
        %623 = vmatpush1.msra.mxu0 0.0
        %624 = vmatprep.subr.mxu0 0.0
        %625 = vmatpush1.msra.mxu0 0.0
        %626 = vmatprep.subr.mxu0 0.0
        %627 = vmatpush1.msra.mxu0 0.0
        %628 = vmatprep.subr.mxu0 0.0
        %629 = vmatpush1.msra.mxu0 %v449
        %630 = vmatprep.subr.mxu0 0.0
        %631 = vmatpush1.msra.mxu0 %v448
        %632 = vmatprep.subr.mxu0 0.0
        %633 = vmatpush2.msra.mxu0 0.0
        %634 = vmatprep.subr.mxu0 0.0
        %635 = vmatpush2.msra.mxu0 0.0
        %636 = vmatprep.subr.mxu0 0.0
        %637 = vmatpush2.msra.mxu0 0.0
        %638 = vmatprep.subr.mxu0 0.0
        %639 = vmatpush2.msra.mxu0 0.0
        %640 = vmatprep.subr.mxu0 0.0
        %641 = vmatpush2.msra.mxu0 0.0
        %642 = vmatprep.subr.mxu0 0.0
        %643 = vmatpush2.msra.mxu0 0.0
        %644 = vmatprep.subr.mxu0 0.0
        %645 = vmatpush2.msra.mxu0 0.0
        %646 = vmatprep.subr.mxu0 0.0
        %647 = vmatpush2.msra.mxu0 0.0
        %648 = vmatprep.subr.mxu0 0.0
        %649 = vmatpush2.msra.mxu0 0.0
        %650 = vmatprep.subr.mxu0 0.0
        %651 = vmatpush2.msra.mxu0 0.0
        %652 = vmatprep.subr.mxu0 0.0
        %653 = vmatpush2.msra.mxu0 0.0
        %654 = vmatprep.subr.mxu0 0.0
        %655 = vmatpush2.msra.mxu0 0.0
        %656 = vmatprep.subr.mxu0 0.0
        %657 = vmatpush2.msra.mxu0 0.0
        %658 = vmatprep.subr.mxu0 0.0
        %659 = vmatpush2.msra.mxu0 0.0
        %660 = vmatprep.subr.mxu0 0.0
        %661 = vmatpush2.msra.mxu0 0.0
        %662 = vmatprep.subr.mxu0 0.0
        %663 = vmatpush2.msra.mxu0 0.0
        %664 = vmatprep.mubr.f32.mxu0 0.0
        %665 = vmatmul.mubr.f32.gmra.mxu0 %v598
        %v666 = vpop.f32.mrf.mxu0
        %v667 = vadd.f32 0.0, %v666
        %v668 = vpop.f32.mrf.mxu0
        %669 = vdwg.mxu0
        %v670 = vld [vmem:[%s347] sm:$0xff]
        %v671 = vld [vmem:[%s347 + $0x8] sm:$0xff]
        %v672 = vld [vmem:[%s347 + $0x10] sm:$0xff]
        %v673 = vld [vmem:[%s365] sm:$0xff]
        %v674 = vld [vmem:[%s365 + $0x8] sm:$0xff]
        %v675 = vld [vmem:[%s365 + $0x10] sm:$0xff]
        %v676 = vld [vmem:[%s365 + $0x18] sm:$0xff]
        %v677 = vld [vmem:[%s365 + $0x20] sm:$0xff]
        %v678 = vld [vmem:[%s365 + $0x28] sm:$0xff]
        %v680 = vsel %vm450, %v670, 0
        %682 = vmatprep.subr.mxu0 0.0
        %683 = vmatpush1.msra.mxu0 0.0
        %684 = vmatprep.subr.mxu0 0.0
        %685 = vmatpush1.msra.mxu0 0.0
        %686 = vmatprep.subr.mxu0 0.0
        %687 = vmatpush1.msra.mxu0 0.0
        %688 = vmatprep.subr.mxu0 0.0
        %689 = vmatpush1.msra.mxu0 0.0
        %690 = vmatprep.subr.mxu0 0.0
        %691 = vmatpush1.msra.mxu0 0.0
        %692 = vmatprep.subr.mxu0 0.0
        %693 = vmatpush1.msra.mxu0 0.0
        %694 = vmatprep.subr.mxu0 0.0
        %695 = vmatpush1.msra.mxu0 0.0
        %696 = vmatprep.subr.mxu0 0.0
        %697 = vmatpush1.msra.mxu0 0.0
        %698 = vmatprep.subr.mxu0 0.0
        %699 = vmatpush1.msra.mxu0 0.0
        %700 = vmatprep.subr.mxu0 0.0
        %701 = vmatpush1.msra.mxu0 0.0
        %702 = vmatprep.subr.mxu0 0.0
        %703 = vmatpush1.msra.mxu0 0.0
        %704 = vmatprep.subr.mxu0 0.0
        %705 = vmatpush1.msra.mxu0 0.0
        %706 = vmatprep.subr.mxu0 0.0
        %707 = vmatpush1.msra.mxu0 0.0
        %708 = vmatprep.subr.mxu0 0.0
        %709 = vmatpush1.msra.mxu0 0.0
        %710 = vmatprep.subr.mxu0 0.0
        %711 = vmatpush1.msra.mxu0 %v674
        %712 = vmatprep.subr.mxu0 0.0
        %713 = vmatpush1.msra.mxu0 %v673
        %714 = vmatprep.subr.mxu0 0.0
        %715 = vmatpush2.msra.mxu0 0.0
        %716 = vmatprep.subr.mxu0 0.0
        %717 = vmatpush2.msra.mxu0 0.0
        %718 = vmatprep.subr.mxu0 0.0
        %719 = vmatpush2.msra.mxu0 0.0
        %720 = vmatprep.subr.mxu0 0.0
        %721 = vmatpush2.msra.mxu0 0.0
        %722 = vmatprep.subr.mxu0 0.0
        %723 = vmatpush2.msra.mxu0 0.0
        %724 = vmatprep.subr.mxu0 0.0
        %725 = vmatpush2.msra.mxu0 0.0
        %726 = vmatprep.subr.mxu0 0.0
        %727 = vmatpush2.msra.mxu0 0.0
        %728 = vmatprep.subr.mxu0 0.0
        %729 = vmatpush2.msra.mxu0 0.0
        %730 = vmatprep.subr.mxu0 0.0
        %731 = vmatpush2.msra.mxu0 0.0
        %732 = vmatprep.subr.mxu0 0.0
        %733 = vmatpush2.msra.mxu0 0.0
        %734 = vmatprep.subr.mxu0 0.0
        %735 = vmatpush2.msra.mxu0 0.0
        %736 = vmatprep.subr.mxu0 0.0
        %737 = vmatpush2.msra.mxu0 0.0
        %738 = vmatprep.subr.mxu0 0.0
        %739 = vmatpush2.msra.mxu0 0.0
        %740 = vmatprep.subr.mxu0 0.0
        %741 = vmatpush2.msra.mxu0 0.0
        %742 = vmatprep.subr.mxu0 0.0
        %743 = vmatpush2.msra.mxu0 0.0
        %744 = vmatprep.subr.mxu0 0.0
        %745 = vmatpush2.msra.mxu0 0.0
        %746 = vmatprep.mubr.f32.mxu0 0.0
        %747 = vmatmul.mubr.f32.gmra.mxu0 %v680
        %v748 = vpop.f32.mrf.mxu0
        %v749 = vadd.f32 0.0, %v748
        %v750 = vpop.f32.mrf.mxu0
        %751 = vdwg.mxu0
        %v753 = vsel %vm450, %v671, 0
        %755 = vmatprep.subr.mxu0 0.0
        %756 = vmatpush1.msra.mxu0 0.0
        %757 = vmatprep.subr.mxu0 0.0
        %758 = vmatpush1.msra.mxu0 0.0
        %759 = vmatprep.subr.mxu0 0.0
        %760 = vmatpush1.msra.mxu0 0.0
        %761 = vmatprep.subr.mxu0 0.0
        %762 = vmatpush1.msra.mxu0 0.0
        %763 = vmatprep.subr.mxu0 0.0
        %764 = vmatpush1.msra.mxu0 0.0
        %765 = vmatprep.subr.mxu0 0.0
        %766 = vmatpush1.msra.mxu0 0.0
        %767 = vmatprep.subr.mxu0 0.0
        %768 = vmatpush1.msra.mxu0 0.0
        %769 = vmatprep.subr.mxu0 0.0
        %770 = vmatpush1.msra.mxu0 0.0
        %771 = vmatprep.subr.mxu0 0.0
        %772 = vmatpush1.msra.mxu0 0.0
        %773 = vmatprep.subr.mxu0 0.0
        %774 = vmatpush1.msra.mxu0 0.0
        %775 = vmatprep.subr.mxu0 0.0
        %776 = vmatpush1.msra.mxu0 0.0
        %777 = vmatprep.subr.mxu0 0.0
        %778 = vmatpush1.msra.mxu0 0.0
        %779 = vmatprep.subr.mxu0 0.0
        %780 = vmatpush1.msra.mxu0 0.0
        %781 = vmatprep.subr.mxu0 0.0
        %782 = vmatpush1.msra.mxu0 0.0
        %783 = vmatprep.subr.mxu0 0.0
        %784 = vmatpush1.msra.mxu0 %v676
        %785 = vmatprep.subr.mxu0 0.0
        %786 = vmatpush1.msra.mxu0 %v675
        %787 = vmatprep.subr.mxu0 0.0
        %788 = vmatpush2.msra.mxu0 0.0
        %789 = vmatprep.subr.mxu0 0.0
        %790 = vmatpush2.msra.mxu0 0.0
        %791 = vmatprep.subr.mxu0 0.0
        %792 = vmatpush2.msra.mxu0 0.0
        %793 = vmatprep.subr.mxu0 0.0
        %794 = vmatpush2.msra.mxu0 0.0
        %795 = vmatprep.subr.mxu0 0.0
        %796 = vmatpush2.msra.mxu0 0.0
        %797 = vmatprep.subr.mxu0 0.0
        %798 = vmatpush2.msra.mxu0 0.0
        %799 = vmatprep.subr.mxu0 0.0
        %800 = vmatpush2.msra.mxu0 0.0
        %801 = vmatprep.subr.mxu0 0.0
        %802 = vmatpush2.msra.mxu0 0.0
        %803 = vmatprep.subr.mxu0 0.0
        %804 = vmatpush2.msra.mxu0 0.0
        %805 = vmatprep.subr.mxu0 0.0
        %806 = vmatpush2.msra.mxu0 0.0
        %807 = vmatprep.subr.mxu0 0.0
        %808 = vmatpush2.msra.mxu0 0.0
        %809 = vmatprep.subr.mxu0 0.0
        %810 = vmatpush2.msra.mxu0 0.0
        %811 = vmatprep.subr.mxu0 0.0
        %812 = vmatpush2.msra.mxu0 0.0
        %813 = vmatprep.subr.mxu0 0.0
        %814 = vmatpush2.msra.mxu0 0.0
        %815 = vmatprep.subr.mxu0 0.0
        %816 = vmatpush2.msra.mxu0 0.0
        %817 = vmatprep.subr.mxu0 0.0
        %818 = vmatpush2.msra.mxu0 0.0
        %819 = vmatprep.mubr.f32.mxu0 0.0
        %820 = vmatmul.mubr.f32.gmra.mxu0 %v753
        %v821 = vpop.f32.mrf.mxu0
        %v822 = vadd.f32 0.0, %v821
        %v823 = vpop.f32.mrf.mxu0
        %824 = vdwg.mxu0
        %v826 = vsel %vm450, %v672, 0
        %828 = vmatprep.subr.mxu0 0.0
        %829 = vmatpush1.msra.mxu0 0.0
        %830 = vmatprep.subr.mxu0 0.0
        %831 = vmatpush1.msra.mxu0 0.0
        %832 = vmatprep.subr.mxu0 0.0
        %833 = vmatpush1.msra.mxu0 0.0
        %834 = vmatprep.subr.mxu0 0.0
        %835 = vmatpush1.msra.mxu0 0.0
        %836 = vmatprep.subr.mxu0 0.0
        %837 = vmatpush1.msra.mxu0 0.0
        %838 = vmatprep.subr.mxu0 0.0
        %839 = vmatpush1.msra.mxu0 0.0
        %840 = vmatprep.subr.mxu0 0.0
        %841 = vmatpush1.msra.mxu0 0.0
        %842 = vmatprep.subr.mxu0 0.0
        %843 = vmatpush1.msra.mxu0 0.0
        %844 = vmatprep.subr.mxu0 0.0
        %845 = vmatpush1.msra.mxu0 0.0
        %846 = vmatprep.subr.mxu0 0.0
        %847 = vmatpush1.msra.mxu0 0.0
        %848 = vmatprep.subr.mxu0 0.0
        %849 = vmatpush1.msra.mxu0 0.0
        %850 = vmatprep.subr.mxu0 0.0
        %851 = vmatpush1.msra.mxu0 0.0
        %852 = vmatprep.subr.mxu0 0.0
        %853 = vmatpush1.msra.mxu0 0.0
        %854 = vmatprep.subr.mxu0 0.0
        %855 = vmatpush1.msra.mxu0 0.0
        %856 = vmatprep.subr.mxu0 0.0
        %857 = vmatpush1.msra.mxu0 %v678
        %858 = vmatprep.subr.mxu0 0.0
        %859 = vmatpush1.msra.mxu0 %v677
        %860 = vmatprep.subr.mxu0 0.0
        %861 = vmatpush2.msra.mxu0 0.0
        %862 = vmatprep.subr.mxu0 0.0
        %863 = vmatpush2.msra.mxu0 0.0
        %864 = vmatprep.subr.mxu0 0.0
        %865 = vmatpush2.msra.mxu0 0.0
        %866 = vmatprep.subr.mxu0 0.0
        %867 = vmatpush2.msra.mxu0 0.0
        %868 = vmatprep.subr.mxu0 0.0
        %869 = vmatpush2.msra.mxu0 0.0
        %870 = vmatprep.subr.mxu0 0.0
        %871 = vmatpush2.msra.mxu0 0.0
        %872 = vmatprep.subr.mxu0 0.0
        %873 = vmatpush2.msra.mxu0 0.0
        %874 = vmatprep.subr.mxu0 0.0
        %875 = vmatpush2.msra.mxu0 0.0
        %876 = vmatprep.subr.mxu0 0.0
        %877 = vmatpush2.msra.mxu0 0.0
        %878 = vmatprep.subr.mxu0 0.0
        %879 = vmatpush2.msra.mxu0 0.0
        %880 = vmatprep.subr.mxu0 0.0
        %881 = vmatpush2.msra.mxu0 0.0
        %882 = vmatprep.subr.mxu0 0.0
        %883 = vmatpush2.msra.mxu0 0.0
        %884 = vmatprep.subr.mxu0 0.0
        %885 = vmatpush2.msra.mxu0 0.0
        %886 = vmatprep.subr.mxu0 0.0
        %887 = vmatpush2.msra.mxu0 0.0
        %888 = vmatprep.subr.mxu0 0.0
        %889 = vmatpush2.msra.mxu0 0.0
        %890 = vmatprep.subr.mxu0 0.0
        %891 = vmatpush2.msra.mxu0 0.0
        %892 = vmatprep.mubr.f32.mxu0 0.0
        %893 = vmatmul.mubr.f32.gmra.mxu0 %v826
        %v894 = vpop.f32.mrf.mxu0
        %v895 = vadd.f32 0.0, %v894
        %v896 = vpop.f32.mrf.mxu0
        %897 = vdwg.mxu0
        %v898 = vld [vmem:[%s433] sm:$0xff]
        %v899 = vld [vmem:[%s433 + $0x8] sm:$0xff]
        %v900 = vld [vmem:[%s433 + $0x10] sm:$0xff]
        %v901 = vld [vmem:[#allocation7] sm:$0xff]
        %v902 = vld [vmem:[#allocation7 + $0x8] sm:$0xff]
        %v903 = vld [vmem:[#allocation7 + $0x10] sm:$0xff]
        %v904 = vld [vmem:[#allocation7 + $0x18] sm:$0xff]
        %s905 = scalar_lea.vmem [#allocation7], 32
        %v906 = vld [vmem:[%s905] sm:$0xff]
        %v907 = vld [vmem:[%s905 + $0x8] sm:$0xff]
        %v908 = vld [vmem:[%s905 + $0x10] sm:$0xff]
        %v909 = vld [vmem:[%s905 + $0x18] sm:$0xff]
        %vm910 = vcmask 261120
        %v912 = vsel %vm910, %v749, 0
        %v915 = vsel %vm910, %v822, 0
        %v918 = vsel %vm910, %v895, 0
        %920 = vmatprep.subr.mxu0 0.0
        %921 = vmatpush1.msra.mxu0 0.0
        %922 = vmatprep.subr.mxu0 0.0
        %923 = vmatpush1.msra.mxu0 0.0
        %924 = vmatprep.subr.mxu0 0.0
        %925 = vmatpush1.msra.mxu0 0.0
        %926 = vmatprep.subr.mxu0 0.0
        %927 = vmatpush1.msra.mxu0 0.0
        %928 = vmatprep.subr.mxu0 0.0
        %929 = vmatpush1.msra.mxu0 0.0
        %930 = vmatprep.subr.mxu0 0.0
        %931 = vmatpush1.msra.mxu0 0.0
        %932 = vmatprep.subr.mxu0 0.0
        %933 = vmatpush1.msra.mxu0 0.0
        %934 = vmatprep.subr.mxu0 0.0
        %935 = vmatpush1.msra.mxu0 0.0
        %936 = vmatprep.subr.mxu0 0.0
        %937 = vmatpush1.msra.mxu0 0.0
        %938 = vmatprep.subr.mxu0 0.0
        %939 = vmatpush1.msra.mxu0 0.0
        %940 = vmatprep.subr.mxu0 0.0
        %941 = vmatpush1.msra.mxu0 0.0
        %942 = vmatprep.subr.mxu0 0.0
        %943 = vmatpush1.msra.mxu0 0.0
        %944 = vmatprep.subr.mxu0 0.0
        %945 = vmatpush1.msra.mxu0 %v909
        %946 = vmatprep.subr.mxu0 0.0
        %947 = vmatpush1.msra.mxu0 %v908
        %948 = vmatprep.subr.mxu0 0.0
        %949 = vmatpush1.msra.mxu0 %v907
        %950 = vmatprep.subr.mxu0 0.0
        %951 = vmatpush1.msra.mxu0 %v906
        %952 = vmatprep.subr.mxu0 0.0
        %953 = vmatpush2.msra.mxu0 0.0
        %954 = vmatprep.subr.mxu0 0.0
        %955 = vmatpush2.msra.mxu0 0.0
        %956 = vmatprep.subr.mxu0 0.0
        %957 = vmatpush2.msra.mxu0 0.0
        %958 = vmatprep.subr.mxu0 0.0
        %959 = vmatpush2.msra.mxu0 0.0
        %960 = vmatprep.subr.mxu0 0.0
        %961 = vmatpush2.msra.mxu0 0.0
        %962 = vmatprep.subr.mxu0 0.0
        %963 = vmatpush2.msra.mxu0 0.0
        %964 = vmatprep.subr.mxu0 0.0
        %965 = vmatpush2.msra.mxu0 0.0
        %966 = vmatprep.subr.mxu0 0.0
        %967 = vmatpush2.msra.mxu0 0.0
        %968 = vmatprep.subr.mxu0 0.0
        %969 = vmatpush2.msra.mxu0 0.0
        %970 = vmatprep.subr.mxu0 0.0
        %971 = vmatpush2.msra.mxu0 0.0
        %972 = vmatprep.subr.mxu0 0.0
        %973 = vmatpush2.msra.mxu0 0.0
        %974 = vmatprep.subr.mxu0 0.0
        %975 = vmatpush2.msra.mxu0 0.0
        %976 = vmatprep.subr.mxu0 0.0
        %977 = vmatpush2.msra.mxu0 0.0
        %978 = vmatprep.subr.mxu0 0.0
        %979 = vmatpush2.msra.mxu0 0.0
        %980 = vmatprep.subr.mxu0 0.0
        %981 = vmatpush2.msra.mxu0 0.0
        %982 = vmatprep.subr.mxu0 0.0
        %983 = vmatpush2.msra.mxu0 0.0
        %984 = vmatprep.mubr.f32.mxu0 0.0
        %985 = vmatmul.mubr.f32.gmra.mxu0 %v912
        %v986 = vpop.f32.mrf.mxu0
        %v987 = vadd.f32 0.0, %v986
        %v988 = vpop.f32.mrf.mxu0
        %989 = vmatprep.mubr.f32.mxu0 0.0
        %990 = vmatmul.mubr.f32.gmra.mxu0 %v915
        %v991 = vpop.f32.mrf.mxu0
        %v992 = vadd.f32 0.0, %v991
        %v993 = vpop.f32.mrf.mxu0
        %994 = vmatprep.mubr.f32.mxu0 0.0
        %995 = vmatmul.mubr.f32.gmra.mxu0 %v918
        %v996 = vpop.f32.mrf.mxu0
        %v997 = vadd.f32 0.0, %v996
        %v998 = vpop.f32.mrf.mxu0
        %999 = vdwg.mxu0
        %v1001 = vsel %vm910, %v521, 0
        %v1004 = vsel %vm910, %v594, 0
        %v1007 = vsel %vm910, %v667, 0
        %1009 = vmatprep.subr.mxu0 0.0
        %1010 = vmatpush1.msra.mxu0 0.0
        %1011 = vmatprep.subr.mxu0 0.0
        %1012 = vmatpush1.msra.mxu0 0.0
        %1013 = vmatprep.subr.mxu0 0.0
        %1014 = vmatpush1.msra.mxu0 0.0
        %1015 = vmatprep.subr.mxu0 0.0
        %1016 = vmatpush1.msra.mxu0 0.0
        %1017 = vmatprep.subr.mxu0 0.0
        %1018 = vmatpush1.msra.mxu0 0.0
        %1019 = vmatprep.subr.mxu0 0.0
        %1020 = vmatpush1.msra.mxu0 0.0
        %1021 = vmatprep.subr.mxu0 0.0
        %1022 = vmatpush1.msra.mxu0 0.0
        %1023 = vmatprep.subr.mxu0 0.0
        %1024 = vmatpush1.msra.mxu0 0.0
        %1025 = vmatprep.subr.mxu0 0.0
        %1026 = vmatpush1.msra.mxu0 0.0
        %1027 = vmatprep.subr.mxu0 0.0
        %1028 = vmatpush1.msra.mxu0 0.0
        %1029 = vmatprep.subr.mxu0 0.0
        %1030 = vmatpush1.msra.mxu0 0.0
        %1031 = vmatprep.subr.mxu0 0.0
        %1032 = vmatpush1.msra.mxu0 0.0
        %1033 = vmatprep.subr.mxu0 0.0
        %1034 = vmatpush1.msra.mxu0 %v904
        %1035 = vmatprep.subr.mxu0 0.0
        %1036 = vmatpush1.msra.mxu0 %v903
        %1037 = vmatprep.subr.mxu0 0.0
        %1038 = vmatpush1.msra.mxu0 %v902
        %1039 = vmatprep.subr.mxu0 0.0
        %1040 = vmatpush1.msra.mxu0 %v901
        %1041 = vmatprep.subr.mxu0 0.0
        %1042 = vmatpush2.msra.mxu0 0.0
        %1043 = vmatprep.subr.mxu0 0.0
        %1044 = vmatpush2.msra.mxu0 0.0
        %1045 = vmatprep.subr.mxu0 0.0
        %1046 = vmatpush2.msra.mxu0 0.0
        %1047 = vmatprep.subr.mxu0 0.0
        %1048 = vmatpush2.msra.mxu0 0.0
        %1049 = vmatprep.subr.mxu0 0.0
        %1050 = vmatpush2.msra.mxu0 0.0
        %1051 = vmatprep.subr.mxu0 0.0
        %1052 = vmatpush2.msra.mxu0 0.0
        %1053 = vmatprep.subr.mxu0 0.0
        %1054 = vmatpush2.msra.mxu0 0.0
        %1055 = vmatprep.subr.mxu0 0.0
        %1056 = vmatpush2.msra.mxu0 0.0
        %1057 = vmatprep.subr.mxu0 0.0
        %1058 = vmatpush2.msra.mxu0 0.0
        %1059 = vmatprep.subr.mxu0 0.0
        %1060 = vmatpush2.msra.mxu0 0.0
        %1061 = vmatprep.subr.mxu0 0.0
        %1062 = vmatpush2.msra.mxu0 0.0
        %1063 = vmatprep.subr.mxu0 0.0
        %1064 = vmatpush2.msra.mxu0 0.0
        %1065 = vmatprep.subr.mxu0 0.0
        %1066 = vmatpush2.msra.mxu0 0.0
        %1067 = vmatprep.subr.mxu0 0.0
        %1068 = vmatpush2.msra.mxu0 0.0
        %1069 = vmatprep.subr.mxu0 0.0
        %1070 = vmatpush2.msra.mxu0 0.0
        %1071 = vmatprep.subr.mxu0 0.0
        %1072 = vmatpush2.msra.mxu0 0.0
        %1073 = vmatprep.mubr.f32.mxu0 0.0
        %1074 = vmatmul.mubr.f32.gmra.mxu0 %v1001
        %v1075 = vpop.f32.mrf.mxu0
        %v1076 = vadd.f32 %v987, %v1075
        %v1077 = vpop.f32.mrf.mxu0
        %1078 = vmatprep.mubr.f32.mxu0 0.0
        %1079 = vmatmul.mubr.f32.gmra.mxu0 %v1004
        %v1080 = vpop.f32.mrf.mxu0
        %v1081 = vadd.f32 %v992, %v1080
        %v1082 = vpop.f32.mrf.mxu0
        %1083 = vmatprep.mubr.f32.mxu0 0.0
        %1084 = vmatmul.mubr.f32.gmra.mxu0 %v1007
        %v1085 = vpop.f32.mrf.mxu0
        %v1086 = vadd.f32 %v997, %v1085
        %v1087 = vpop.f32.mrf.mxu0
        %1088 = vdwg.mxu0
        %s1089 = scalar_lea.vmem [#allocation7], 64
        %v1090 = vld [vmem:[%s1089] sm:$0xff]
        %v1091 = vld [vmem:[%s1089 + $0x8] sm:$0xff]
        %v1092 = vld [vmem:[%s1089 + $0x10] sm:$0xff]
        %v1093 = vld [vmem:[%s1089 + $0x18] sm:$0xff]
        %v1095 = vsel %vm910, %v898, 0
        %v1098 = vsel %vm910, %v899, 0
        %v1101 = vsel %vm910, %v900, 0
        %1103 = vmatprep.subr.mxu0 0.0
        %1104 = vmatpush1.msra.mxu0 0.0
        %1105 = vmatprep.subr.mxu0 0.0
        %1106 = vmatpush1.msra.mxu0 0.0
        %1107 = vmatprep.subr.mxu0 0.0
        %1108 = vmatpush1.msra.mxu0 0.0
        %1109 = vmatprep.subr.mxu0 0.0
        %1110 = vmatpush1.msra.mxu0 0.0
        %1111 = vmatprep.subr.mxu0 0.0
        %1112 = vmatpush1.msra.mxu0 0.0
        %1113 = vmatprep.subr.mxu0 0.0
        %1114 = vmatpush1.msra.mxu0 0.0
        %1115 = vmatprep.subr.mxu0 0.0
        %1116 = vmatpush1.msra.mxu0 0.0
        %1117 = vmatprep.subr.mxu0 0.0
        %1118 = vmatpush1.msra.mxu0 0.0
        %1119 = vmatprep.subr.mxu0 0.0
        %1120 = vmatpush1.msra.mxu0 0.0
        %1121 = vmatprep.subr.mxu0 0.0
        %1122 = vmatpush1.msra.mxu0 0.0
        %1123 = vmatprep.subr.mxu0 0.0
        %1124 = vmatpush1.msra.mxu0 0.0
        %1125 = vmatprep.subr.mxu0 0.0
        %1126 = vmatpush1.msra.mxu0 0.0
        %1127 = vmatprep.subr.mxu0 0.0
        %1128 = vmatpush1.msra.mxu0 %v1093
        %1129 = vmatprep.subr.mxu0 0.0
        %1130 = vmatpush1.msra.mxu0 %v1092
        %1131 = vmatprep.subr.mxu0 0.0
        %1132 = vmatpush1.msra.mxu0 %v1091
        %1133 = vmatprep.subr.mxu0 0.0
        %1134 = vmatpush1.msra.mxu0 %v1090
        %1135 = vmatprep.subr.mxu0 0.0
        %1136 = vmatpush2.msra.mxu0 0.0
        %1137 = vmatprep.subr.mxu0 0.0
        %1138 = vmatpush2.msra.mxu0 0.0
        %1139 = vmatprep.subr.mxu0 0.0
        %1140 = vmatpush2.msra.mxu0 0.0
        %1141 = vmatprep.subr.mxu0 0.0
        %1142 = vmatpush2.msra.mxu0 0.0
        %1143 = vmatprep.subr.mxu0 0.0
        %1144 = vmatpush2.msra.mxu0 0.0
        %1145 = vmatprep.subr.mxu0 0.0
        %1146 = vmatpush2.msra.mxu0 0.0
        %1147 = vmatprep.subr.mxu0 0.0
        %1148 = vmatpush2.msra.mxu0 0.0
        %1149 = vmatprep.subr.mxu0 0.0
        %1150 = vmatpush2.msra.mxu0 0.0
        %1151 = vmatprep.subr.mxu0 0.0
        %1152 = vmatpush2.msra.mxu0 0.0
        %1153 = vmatprep.subr.mxu0 0.0
        %1154 = vmatpush2.msra.mxu0 0.0
        %1155 = vmatprep.subr.mxu0 0.0
        %1156 = vmatpush2.msra.mxu0 0.0
        %1157 = vmatprep.subr.mxu0 0.0
        %1158 = vmatpush2.msra.mxu0 0.0
        %1159 = vmatprep.subr.mxu0 0.0
        %1160 = vmatpush2.msra.mxu0 0.0
        %1161 = vmatprep.subr.mxu0 0.0
        %1162 = vmatpush2.msra.mxu0 0.0
        %1163 = vmatprep.subr.mxu0 0.0
        %1164 = vmatpush2.msra.mxu0 0.0
        %1165 = vmatprep.subr.mxu0 0.0
        %1166 = vmatpush2.msra.mxu0 0.0
        %1167 = vmatprep.mubr.f32.mxu0 0.0
        %1168 = vmatmul.mubr.f32.gmra.mxu0 %v1095
        %v1169 = vpop.f32.mrf.mxu0
        %v1170 = vadd.f32 0.0, %v1169
        %v1171 = vpop.f32.mrf.mxu0
        %1172 = vmatprep.mubr.f32.mxu0 0.0
        %1173 = vmatmul.mubr.f32.gmra.mxu0 %v1098
        %v1174 = vpop.f32.mrf.mxu0
        %v1175 = vadd.f32 0.0, %v1174
        %v1176 = vpop.f32.mrf.mxu0
        %1177 = vmatprep.mubr.f32.mxu0 0.0
        %1178 = vmatmul.mubr.f32.gmra.mxu0 %v1101
        %v1179 = vpop.f32.mrf.mxu0
        %v1180 = vadd.f32 0.0, %v1179
        %v1181 = vpop.f32.mrf.mxu0
        %1182 = vdwg.mxu0
        %v1183 = vadd.f32 %v1076, %v1170
        %v1184 = vadd.f32 %v1081, %v1175
        %v1185 = vadd.f32 %v1086, %v1180
        %v1186 = vld [vmem:[%s6] sm:$0x1]
        %v1188 = vlaneseq
        %v1189 = vshrl.u32 %v1188, 7
        %v1190 = vsub.s32 0, %v1189
        %v1191 = vrot.slane %v1186, %v1190
        %v1193 = vadd.f32 %v1183, %v1191
        %v1194 = vadd.f32 %v1184, %v1191
        %v1195 = vadd.f32 %v1185, %v1191
        %v1196 = vxor.u32 %v1193, 2147483648
        %v1197 = vxor.u32 %v1194, 2147483648
        %v1198 = vxor.u32 %v1195, 2147483648
        %v1199 = vmul.f32 %v1196, 1.442695
        %v1200 = vpow.pop %v1199
        %v1201 = vmul.f32 %v1197, 1.442695
        %v1202 = vpow.pop %v1201
        %v1203 = vmul.f32 %v1198, 1.442695
        %v1204 = vpow.pop %v1203
        %v1205 = vadd.f32 %v1200, 1.0
        %v1206 = vadd.f32 %v1202, 1.0
        %v1207 = vadd.f32 %v1204, 1.0
        %v1208 = vrcp.pop %v1205
        %v1209 = vmul.f32 1.0, %v1208
        %v1210 = vrcp.pop %v1206
        %v1211 = vmul.f32 1.0, %v1210
        %v1212 = vrcp.pop %v1207
        %v1213 = vmul.f32 1.0, %v1212
        %s1214 = scalar_lea.vmem [#allocation7], 96
        %v1215 = vld [vmem:[%s1214] sm:$0xff]
        %v1216 = vld [vmem:[%s1214 + $0x8] sm:$0xff]
        %v1217 = vld [vmem:[%s1214 + $0x10] sm:$0xff]
        %v1218 = vld [vmem:[%s1214 + $0x18] sm:$0xff]
        %s1219 = scalar_lea.vmem [#allocation7], 128
        %v1220 = vld [vmem:[%s1219] sm:$0xff]
        %v1221 = vld [vmem:[%s1219 + $0x8] sm:$0xff]
        %v1222 = vld [vmem:[%s1219 + $0x10] sm:$0xff]
        %v1223 = vld [vmem:[%s1219 + $0x18] sm:$0xff]
        %1224 = vmatprep.subr.mxu0 0.0
        %1225 = vmatpush1.msra.mxu0 0.0
        %1226 = vmatprep.subr.mxu0 0.0
        %1227 = vmatpush1.msra.mxu0 0.0
        %1228 = vmatprep.subr.mxu0 0.0
        %1229 = vmatpush1.msra.mxu0 0.0
        %1230 = vmatprep.subr.mxu0 0.0
        %1231 = vmatpush1.msra.mxu0 0.0
        %1232 = vmatprep.subr.mxu0 0.0
        %1233 = vmatpush1.msra.mxu0 0.0
        %1234 = vmatprep.subr.mxu0 0.0
        %1235 = vmatpush1.msra.mxu0 0.0
        %1236 = vmatprep.subr.mxu0 0.0
        %1237 = vmatpush1.msra.mxu0 0.0
        %1238 = vmatprep.subr.mxu0 0.0
        %1239 = vmatpush1.msra.mxu0 0.0
        %1240 = vmatprep.subr.mxu0 0.0
        %1241 = vmatpush1.msra.mxu0 0.0
        %1242 = vmatprep.subr.mxu0 0.0
        %1243 = vmatpush1.msra.mxu0 0.0
        %1244 = vmatprep.subr.mxu0 0.0
        %1245 = vmatpush1.msra.mxu0 0.0
        %1246 = vmatprep.subr.mxu0 0.0
        %1247 = vmatpush1.msra.mxu0 0.0
        %1248 = vmatprep.subr.mxu0 0.0
        %1249 = vmatpush1.msra.mxu0 %v1223
        %1250 = vmatprep.subr.mxu0 0.0
        %1251 = vmatpush1.msra.mxu0 %v1222
        %1252 = vmatprep.subr.mxu0 0.0
        %1253 = vmatpush1.msra.mxu0 %v1221
        %1254 = vmatprep.subr.mxu0 0.0
        %1255 = vmatpush1.msra.mxu0 %v1220
        %1256 = vmatprep.subr.mxu0 0.0
        %1257 = vmatpush2.msra.mxu0 0.0
        %1258 = vmatprep.subr.mxu0 0.0
        %1259 = vmatpush2.msra.mxu0 0.0
        %1260 = vmatprep.subr.mxu0 0.0
        %1261 = vmatpush2.msra.mxu0 0.0
        %1262 = vmatprep.subr.mxu0 0.0
        %1263 = vmatpush2.msra.mxu0 0.0
        %1264 = vmatprep.subr.mxu0 0.0
        %1265 = vmatpush2.msra.mxu0 0.0
        %1266 = vmatprep.subr.mxu0 0.0
        %1267 = vmatpush2.msra.mxu0 0.0
        %1268 = vmatprep.subr.mxu0 0.0
        %1269 = vmatpush2.msra.mxu0 0.0
        %1270 = vmatprep.subr.mxu0 0.0
        %1271 = vmatpush2.msra.mxu0 0.0
        %1272 = vmatprep.subr.mxu0 0.0
        %1273 = vmatpush2.msra.mxu0 0.0
        %1274 = vmatprep.subr.mxu0 0.0
        %1275 = vmatpush2.msra.mxu0 0.0
        %1276 = vmatprep.subr.mxu0 0.0
        %1277 = vmatpush2.msra.mxu0 0.0
        %1278 = vmatprep.subr.mxu0 0.0
        %1279 = vmatpush2.msra.mxu0 0.0
        %1280 = vmatprep.subr.mxu0 0.0
        %1281 = vmatpush2.msra.mxu0 0.0
        %1282 = vmatprep.subr.mxu0 0.0
        %1283 = vmatpush2.msra.mxu0 0.0
        %1284 = vmatprep.subr.mxu0 0.0
        %1285 = vmatpush2.msra.mxu0 0.0
        %1286 = vmatprep.subr.mxu0 0.0
        %1287 = vmatpush2.msra.mxu0 0.0
        %1288 = vmatprep.mubr.f32.mxu0 0.0
        %1289 = vmatmul.mubr.f32.gmra.mxu0 %v912
        %v1290 = vpop.f32.mrf.mxu0
        %v1291 = vadd.f32 0.0, %v1290
        %v1292 = vpop.f32.mrf.mxu0
        %1293 = vmatprep.mubr.f32.mxu0 0.0
        %1294 = vmatmul.mubr.f32.gmra.mxu0 %v915
        %v1295 = vpop.f32.mrf.mxu0
        %v1296 = vadd.f32 0.0, %v1295
        %v1297 = vpop.f32.mrf.mxu0
        %1298 = vmatprep.mubr.f32.mxu0 0.0
        %1299 = vmatmul.mubr.f32.gmra.mxu0 %v918
        %v1300 = vpop.f32.mrf.mxu0
        %v1301 = vadd.f32 0.0, %v1300
        %v1302 = vpop.f32.mrf.mxu0
        %1303 = vdwg.mxu0
        %1304 = vmatprep.subr.mxu0 0.0
        %1305 = vmatpush1.msra.mxu0 0.0
        %1306 = vmatprep.subr.mxu0 0.0
        %1307 = vmatpush1.msra.mxu0 0.0
        %1308 = vmatprep.subr.mxu0 0.0
        %1309 = vmatpush1.msra.mxu0 0.0
        %1310 = vmatprep.subr.mxu0 0.0
        %1311 = vmatpush1.msra.mxu0 0.0
        %1312 = vmatprep.subr.mxu0 0.0
        %1313 = vmatpush1.msra.mxu0 0.0
        %1314 = vmatprep.subr.mxu0 0.0
        %1315 = vmatpush1.msra.mxu0 0.0
        %1316 = vmatprep.subr.mxu0 0.0
        %1317 = vmatpush1.msra.mxu0 0.0
        %1318 = vmatprep.subr.mxu0 0.0
        %1319 = vmatpush1.msra.mxu0 0.0
        %1320 = vmatprep.subr.mxu0 0.0
        %1321 = vmatpush1.msra.mxu0 0.0
        %1322 = vmatprep.subr.mxu0 0.0
        %1323 = vmatpush1.msra.mxu0 0.0
        %1324 = vmatprep.subr.mxu0 0.0
        %1325 = vmatpush1.msra.mxu0 0.0
        %1326 = vmatprep.subr.mxu0 0.0
        %1327 = vmatpush1.msra.mxu0 0.0
        %1328 = vmatprep.subr.mxu0 0.0
        %1329 = vmatpush1.msra.mxu0 %v1218
        %1330 = vmatprep.subr.mxu0 0.0
        %1331 = vmatpush1.msra.mxu0 %v1217
        %1332 = vmatprep.subr.mxu0 0.0
        %1333 = vmatpush1.msra.mxu0 %v1216
        %1334 = vmatprep.subr.mxu0 0.0
        %1335 = vmatpush1.msra.mxu0 %v1215
        %1336 = vmatprep.subr.mxu0 0.0
        %1337 = vmatpush2.msra.mxu0 0.0
        %1338 = vmatprep.subr.mxu0 0.0
        %1339 = vmatpush2.msra.mxu0 0.0
        %1340 = vmatprep.subr.mxu0 0.0
        %1341 = vmatpush2.msra.mxu0 0.0
        %1342 = vmatprep.subr.mxu0 0.0
        %1343 = vmatpush2.msra.mxu0 0.0
        %1344 = vmatprep.subr.mxu0 0.0
        %1345 = vmatpush2.msra.mxu0 0.0
        %1346 = vmatprep.subr.mxu0 0.0
        %1347 = vmatpush2.msra.mxu0 0.0
        %1348 = vmatprep.subr.mxu0 0.0
        %1349 = vmatpush2.msra.mxu0 0.0
        %1350 = vmatprep.subr.mxu0 0.0
        %1351 = vmatpush2.msra.mxu0 0.0
        %1352 = vmatprep.subr.mxu0 0.0
        %1353 = vmatpush2.msra.mxu0 0.0
        %1354 = vmatprep.subr.mxu0 0.0
        %1355 = vmatpush2.msra.mxu0 0.0
        %1356 = vmatprep.subr.mxu0 0.0
        %1357 = vmatpush2.msra.mxu0 0.0
        %1358 = vmatprep.subr.mxu0 0.0
        %1359 = vmatpush2.msra.mxu0 0.0
        %1360 = vmatprep.subr.mxu0 0.0
        %1361 = vmatpush2.msra.mxu0 0.0
        %1362 = vmatprep.subr.mxu0 0.0
        %1363 = vmatpush2.msra.mxu0 0.0
        %1364 = vmatprep.subr.mxu0 0.0
        %1365 = vmatpush2.msra.mxu0 0.0
        %1366 = vmatprep.subr.mxu0 0.0
        %1367 = vmatpush2.msra.mxu0 0.0
        %1368 = vmatprep.mubr.f32.mxu0 0.0
        %1369 = vmatmul.mubr.f32.gmra.mxu0 %v1001
        %v1370 = vpop.f32.mrf.mxu0
        %v1371 = vadd.f32 %v1291, %v1370
        %v1372 = vpop.f32.mrf.mxu0
        %1373 = vmatprep.mubr.f32.mxu0 0.0
        %1374 = vmatmul.mubr.f32.gmra.mxu0 %v1004
        %v1375 = vpop.f32.mrf.mxu0
        %v1376 = vadd.f32 %v1296, %v1375
        %v1377 = vpop.f32.mrf.mxu0
        %1378 = vmatprep.mubr.f32.mxu0 0.0
        %1379 = vmatmul.mubr.f32.gmra.mxu0 %v1007
        %v1380 = vpop.f32.mrf.mxu0
        %v1381 = vadd.f32 %v1301, %v1380
        %v1382 = vpop.f32.mrf.mxu0
        %1383 = vdwg.mxu0
        %s1384 = scalar_lea.vmem [#allocation7], 160
        %v1385 = vld [vmem:[%s1384] sm:$0xff]
        %v1386 = vld [vmem:[%s1384 + $0x8] sm:$0xff]
        %v1387 = vld [vmem:[%s1384 + $0x10] sm:$0xff]
        %v1388 = vld [vmem:[%s1384 + $0x18] sm:$0xff]
        %1389 = vmatprep.subr.mxu0 0.0
        %1390 = vmatpush1.msra.mxu0 0.0
        %1391 = vmatprep.subr.mxu0 0.0
        %1392 = vmatpush1.msra.mxu0 0.0
        %1393 = vmatprep.subr.mxu0 0.0
        %1394 = vmatpush1.msra.mxu0 0.0
        %1395 = vmatprep.subr.mxu0 0.0
        %1396 = vmatpush1.msra.mxu0 0.0
        %1397 = vmatprep.subr.mxu0 0.0
        %1398 = vmatpush1.msra.mxu0 0.0
        %1399 = vmatprep.subr.mxu0 0.0
        %1400 = vmatpush1.msra.mxu0 0.0
        %1401 = vmatprep.subr.mxu0 0.0
        %1402 = vmatpush1.msra.mxu0 0.0
        %1403 = vmatprep.subr.mxu0 0.0
        %1404 = vmatpush1.msra.mxu0 0.0
        %1405 = vmatprep.subr.mxu0 0.0
        %1406 = vmatpush1.msra.mxu0 0.0
        %1407 = vmatprep.subr.mxu0 0.0
        %1408 = vmatpush1.msra.mxu0 0.0
        %1409 = vmatprep.subr.mxu0 0.0
        %1410 = vmatpush1.msra.mxu0 0.0
        %1411 = vmatprep.subr.mxu0 0.0
        %1412 = vmatpush1.msra.mxu0 0.0
        %1413 = vmatprep.subr.mxu0 0.0
        %1414 = vmatpush1.msra.mxu0 %v1388
        %1415 = vmatprep.subr.mxu0 0.0
        %1416 = vmatpush1.msra.mxu0 %v1387
        %1417 = vmatprep.subr.mxu0 0.0
        %1418 = vmatpush1.msra.mxu0 %v1386
        %1419 = vmatprep.subr.mxu0 0.0
        %1420 = vmatpush1.msra.mxu0 %v1385
        %1421 = vmatprep.subr.mxu0 0.0
        %1422 = vmatpush2.msra.mxu0 0.0
        %1423 = vmatprep.subr.mxu0 0.0
        %1424 = vmatpush2.msra.mxu0 0.0
        %1425 = vmatprep.subr.mxu0 0.0
        %1426 = vmatpush2.msra.mxu0 0.0
        %1427 = vmatprep.subr.mxu0 0.0
        %1428 = vmatpush2.msra.mxu0 0.0
        %1429 = vmatprep.subr.mxu0 0.0
        %1430 = vmatpush2.msra.mxu0 0.0
        %1431 = vmatprep.subr.mxu0 0.0
        %1432 = vmatpush2.msra.mxu0 0.0
        %1433 = vmatprep.subr.mxu0 0.0
        %1434 = vmatpush2.msra.mxu0 0.0
        %1435 = vmatprep.subr.mxu0 0.0
        %1436 = vmatpush2.msra.mxu0 0.0
        %1437 = vmatprep.subr.mxu0 0.0
        %1438 = vmatpush2.msra.mxu0 0.0
        %1439 = vmatprep.subr.mxu0 0.0
        %1440 = vmatpush2.msra.mxu0 0.0
        %1441 = vmatprep.subr.mxu0 0.0
        %1442 = vmatpush2.msra.mxu0 0.0
        %1443 = vmatprep.subr.mxu0 0.0
        %1444 = vmatpush2.msra.mxu0 0.0
        %1445 = vmatprep.subr.mxu0 0.0
        %1446 = vmatpush2.msra.mxu0 0.0
        %1447 = vmatprep.subr.mxu0 0.0
        %1448 = vmatpush2.msra.mxu0 0.0
        %1449 = vmatprep.subr.mxu0 0.0
        %1450 = vmatpush2.msra.mxu0 0.0
        %1451 = vmatprep.subr.mxu0 0.0
        %1452 = vmatpush2.msra.mxu0 0.0
        %1453 = vmatprep.mubr.f32.mxu0 0.0
        %1454 = vmatmul.mubr.f32.gmra.mxu0 %v1095
        %v1455 = vpop.f32.mrf.mxu0
        %v1456 = vadd.f32 0.0, %v1455
        %v1457 = vpop.f32.mrf.mxu0
        %1458 = vmatprep.mubr.f32.mxu0 0.0
        %1459 = vmatmul.mubr.f32.gmra.mxu0 %v1098
        %v1460 = vpop.f32.mrf.mxu0
        %v1461 = vadd.f32 0.0, %v1460
        %v1462 = vpop.f32.mrf.mxu0
        %1463 = vmatprep.mubr.f32.mxu0 0.0
        %1464 = vmatmul.mubr.f32.gmra.mxu0 %v1101
        %v1465 = vpop.f32.mrf.mxu0
        %v1466 = vadd.f32 0.0, %v1465
        %v1467 = vpop.f32.mrf.mxu0
        %1468 = vdwg.mxu0
        %v1469 = vadd.f32 %v1371, %v1456
        %v1470 = vadd.f32 %v1376, %v1461
        %v1471 = vadd.f32 %v1381, %v1466
        %s1472 = scalar_lea.vmem %s6, 1
        %v1473 = vld [vmem:[%s1472] sm:$0x1]
        %v1475 = vlaneseq
        %v1476 = vshrl.u32 %v1475, 7
        %v1477 = vsub.s32 0, %v1476
        %v1478 = vrot.slane %v1473, %v1477
        %v1480 = vadd.f32 %v1469, %v1478
        %v1481 = vadd.f32 %v1470, %v1478
        %v1482 = vadd.f32 %v1471, %v1478
        %v1483 = vxor.u32 %v1480, 2147483648
        %v1484 = vxor.u32 %v1481, 2147483648
        %v1485 = vxor.u32 %v1482, 2147483648
        %v1486 = vmul.f32 %v1483, 1.442695
        %v1487 = vpow.pop %v1486
        %v1488 = vmul.f32 %v1484, 1.442695
        %v1489 = vpow.pop %v1488
        %v1490 = vmul.f32 %v1485, 1.442695
        %v1491 = vpow.pop %v1490
        %v1492 = vadd.f32 %v1487, 1.0
        %v1493 = vadd.f32 %v1489, 1.0
        %v1494 = vadd.f32 %v1491, 1.0
        %v1495 = vrcp.pop %v1492
        %v1496 = vmul.f32 1.0, %v1495
        %v1497 = vrcp.pop %v1493
        %v1498 = vmul.f32 1.0, %v1497
        %v1499 = vrcp.pop %v1494
        %v1500 = vmul.f32 1.0, %v1499
        %s1501 = scalar_lea.vmem [#allocation7], 192
        %v1502 = vld [vmem:[%s1501] sm:$0xff]
        %v1503 = vld [vmem:[%s1501 + $0x8] sm:$0xff]
        %v1504 = vld [vmem:[%s1501 + $0x10] sm:$0xff]
        %v1505 = vld [vmem:[%s1501 + $0x18] sm:$0xff]
        %s1506 = scalar_lea.vmem [#allocation7], 224
        %v1507 = vld [vmem:[%s1506] sm:$0xff]
        %v1508 = vld [vmem:[%s1506 + $0x8] sm:$0xff]
        %v1509 = vld [vmem:[%s1506 + $0x10] sm:$0xff]
        %v1510 = vld [vmem:[%s1506 + $0x18] sm:$0xff]
        %1511 = vmatprep.subr.mxu0 0.0
        %1512 = vmatpush1.msra.mxu0 0.0
        %1513 = vmatprep.subr.mxu0 0.0
        %1514 = vmatpush1.msra.mxu0 0.0
        %1515 = vmatprep.subr.mxu0 0.0
        %1516 = vmatpush1.msra.mxu0 0.0
        %1517 = vmatprep.subr.mxu0 0.0
        %1518 = vmatpush1.msra.mxu0 0.0
        %1519 = vmatprep.subr.mxu0 0.0
        %1520 = vmatpush1.msra.mxu0 0.0
        %1521 = vmatprep.subr.mxu0 0.0
        %1522 = vmatpush1.msra.mxu0 0.0
        %1523 = vmatprep.subr.mxu0 0.0
        %1524 = vmatpush1.msra.mxu0 0.0
        %1525 = vmatprep.subr.mxu0 0.0
        %1526 = vmatpush1.msra.mxu0 0.0
        %1527 = vmatprep.subr.mxu0 0.0
        %1528 = vmatpush1.msra.mxu0 0.0
        %1529 = vmatprep.subr.mxu0 0.0
        %1530 = vmatpush1.msra.mxu0 0.0
        %1531 = vmatprep.subr.mxu0 0.0
        %1532 = vmatpush1.msra.mxu0 0.0
        %1533 = vmatprep.subr.mxu0 0.0
        %1534 = vmatpush1.msra.mxu0 0.0
        %1535 = vmatprep.subr.mxu0 0.0
        %1536 = vmatpush1.msra.mxu0 %v1510
        %1537 = vmatprep.subr.mxu0 0.0
        %1538 = vmatpush1.msra.mxu0 %v1509
        %1539 = vmatprep.subr.mxu0 0.0
        %1540 = vmatpush1.msra.mxu0 %v1508
        %1541 = vmatprep.subr.mxu0 0.0
        %1542 = vmatpush1.msra.mxu0 %v1507
        %1543 = vmatprep.subr.mxu0 0.0
        %1544 = vmatpush2.msra.mxu0 0.0
        %1545 = vmatprep.subr.mxu0 0.0
        %1546 = vmatpush2.msra.mxu0 0.0
        %1547 = vmatprep.subr.mxu0 0.0
        %1548 = vmatpush2.msra.mxu0 0.0
        %1549 = vmatprep.subr.mxu0 0.0
        %1550 = vmatpush2.msra.mxu0 0.0
        %1551 = vmatprep.subr.mxu0 0.0
        %1552 = vmatpush2.msra.mxu0 0.0
        %1553 = vmatprep.subr.mxu0 0.0
        %1554 = vmatpush2.msra.mxu0 0.0
        %1555 = vmatprep.subr.mxu0 0.0
        %1556 = vmatpush2.msra.mxu0 0.0
        %1557 = vmatprep.subr.mxu0 0.0
        %1558 = vmatpush2.msra.mxu0 0.0
        %1559 = vmatprep.subr.mxu0 0.0
        %1560 = vmatpush2.msra.mxu0 0.0
        %1561 = vmatprep.subr.mxu0 0.0
        %1562 = vmatpush2.msra.mxu0 0.0
        %1563 = vmatprep.subr.mxu0 0.0
        %1564 = vmatpush2.msra.mxu0 0.0
        %1565 = vmatprep.subr.mxu0 0.0
        %1566 = vmatpush2.msra.mxu0 0.0
        %1567 = vmatprep.subr.mxu0 0.0
        %1568 = vmatpush2.msra.mxu0 0.0
        %1569 = vmatprep.subr.mxu0 0.0
        %1570 = vmatpush2.msra.mxu0 0.0
        %1571 = vmatprep.subr.mxu0 0.0
        %1572 = vmatpush2.msra.mxu0 0.0
        %1573 = vmatprep.subr.mxu0 0.0
        %1574 = vmatpush2.msra.mxu0 0.0
        %1575 = vmatprep.mubr.f32.mxu0 0.0
        %1576 = vmatmul.mubr.f32.gmra.mxu0 %v912
        %v1577 = vpop.f32.mrf.mxu0
        %v1578 = vadd.f32 0.0, %v1577
        %v1579 = vpop.f32.mrf.mxu0
        %1580 = vmatprep.mubr.f32.mxu0 0.0
        %1581 = vmatmul.mubr.f32.gmra.mxu0 %v915
        %v1582 = vpop.f32.mrf.mxu0
        %v1583 = vadd.f32 0.0, %v1582
        %v1584 = vpop.f32.mrf.mxu0
        %1585 = vmatprep.mubr.f32.mxu0 0.0
        %1586 = vmatmul.mubr.f32.gmra.mxu0 %v918
        %v1587 = vpop.f32.mrf.mxu0
        %v1588 = vadd.f32 0.0, %v1587
        %v1589 = vpop.f32.mrf.mxu0
        %1590 = vdwg.mxu0
        %1591 = vmatprep.subr.mxu0 0.0
        %1592 = vmatpush1.msra.mxu0 0.0
        %1593 = vmatprep.subr.mxu0 0.0
        %1594 = vmatpush1.msra.mxu0 0.0
        %1595 = vmatprep.subr.mxu0 0.0
        %1596 = vmatpush1.msra.mxu0 0.0
        %1597 = vmatprep.subr.mxu0 0.0
        %1598 = vmatpush1.msra.mxu0 0.0
        %1599 = vmatprep.subr.mxu0 0.0
        %1600 = vmatpush1.msra.mxu0 0.0
        %1601 = vmatprep.subr.mxu0 0.0
        %1602 = vmatpush1.msra.mxu0 0.0
        %1603 = vmatprep.subr.mxu0 0.0
        %1604 = vmatpush1.msra.mxu0 0.0
        %1605 = vmatprep.subr.mxu0 0.0
        %1606 = vmatpush1.msra.mxu0 0.0
        %1607 = vmatprep.subr.mxu0 0.0
        %1608 = vmatpush1.msra.mxu0 0.0
        %1609 = vmatprep.subr.mxu0 0.0
        %1610 = vmatpush1.msra.mxu0 0.0
        %1611 = vmatprep.subr.mxu0 0.0
        %1612 = vmatpush1.msra.mxu0 0.0
        %1613 = vmatprep.subr.mxu0 0.0
        %1614 = vmatpush1.msra.mxu0 0.0
        %1615 = vmatprep.subr.mxu0 0.0
        %1616 = vmatpush1.msra.mxu0 %v1505
        %1617 = vmatprep.subr.mxu0 0.0
        %1618 = vmatpush1.msra.mxu0 %v1504
        %1619 = vmatprep.subr.mxu0 0.0
        %1620 = vmatpush1.msra.mxu0 %v1503
        %1621 = vmatprep.subr.mxu0 0.0
        %1622 = vmatpush1.msra.mxu0 %v1502
        %1623 = vmatprep.subr.mxu0 0.0
        %1624 = vmatpush2.msra.mxu0 0.0
        %1625 = vmatprep.subr.mxu0 0.0
        %1626 = vmatpush2.msra.mxu0 0.0
        %1627 = vmatprep.subr.mxu0 0.0
        %1628 = vmatpush2.msra.mxu0 0.0
        %1629 = vmatprep.subr.mxu0 0.0
        %1630 = vmatpush2.msra.mxu0 0.0
        %1631 = vmatprep.subr.mxu0 0.0
        %1632 = vmatpush2.msra.mxu0 0.0
        %1633 = vmatprep.subr.mxu0 0.0
        %1634 = vmatpush2.msra.mxu0 0.0
        %1635 = vmatprep.subr.mxu0 0.0
        %1636 = vmatpush2.msra.mxu0 0.0
        %1637 = vmatprep.subr.mxu0 0.0
        %1638 = vmatpush2.msra.mxu0 0.0
        %1639 = vmatprep.subr.mxu0 0.0
        %1640 = vmatpush2.msra.mxu0 0.0
        %1641 = vmatprep.subr.mxu0 0.0
        %1642 = vmatpush2.msra.mxu0 0.0
        %1643 = vmatprep.subr.mxu0 0.0
        %1644 = vmatpush2.msra.mxu0 0.0
        %1645 = vmatprep.subr.mxu0 0.0
        %1646 = vmatpush2.msra.mxu0 0.0
        %1647 = vmatprep.subr.mxu0 0.0
        %1648 = vmatpush2.msra.mxu0 0.0
        %1649 = vmatprep.subr.mxu0 0.0
        %1650 = vmatpush2.msra.mxu0 0.0
        %1651 = vmatprep.subr.mxu0 0.0
        %1652 = vmatpush2.msra.mxu0 0.0
        %1653 = vmatprep.subr.mxu0 0.0
        %1654 = vmatpush2.msra.mxu0 0.0
        %1655 = vmatprep.mubr.f32.mxu0 0.0
        %1656 = vmatmul.mubr.f32.gmra.mxu0 %v1001
        %v1657 = vpop.f32.mrf.mxu0
        %v1658 = vadd.f32 %v1578, %v1657
        %v1659 = vpop.f32.mrf.mxu0
        %1660 = vmatprep.mubr.f32.mxu0 0.0
        %1661 = vmatmul.mubr.f32.gmra.mxu0 %v1004
        %v1662 = vpop.f32.mrf.mxu0
        %v1663 = vadd.f32 %v1583, %v1662
        %v1664 = vpop.f32.mrf.mxu0
        %1665 = vmatprep.mubr.f32.mxu0 0.0
        %1666 = vmatmul.mubr.f32.gmra.mxu0 %v1007
        %v1667 = vpop.f32.mrf.mxu0
        %v1668 = vadd.f32 %v1588, %v1667
        %v1669 = vpop.f32.mrf.mxu0
        %1670 = vdwg.mxu0
        %v1671 = vmul.f32 %v1209, %v898
        %v1672 = vmul.f32 %v1211, %v899
        %v1673 = vmul.f32 %v1213, %v900
        %s1674 = scalar_lea.vmem [#allocation7], 256
        %v1675 = vld [vmem:[%s1674] sm:$0xff]
        %v1676 = vld [vmem:[%s1674 + $0x8] sm:$0xff]
        %v1677 = vld [vmem:[%s1674 + $0x10] sm:$0xff]
        %v1678 = vld [vmem:[%s1674 + $0x18] sm:$0xff]
        %v1680 = vsel %vm910, %v1671, 0
        %v1683 = vsel %vm910, %v1672, 0
        %v1686 = vsel %vm910, %v1673, 0
        %1688 = vmatprep.subr.mxu0 0.0
        %1689 = vmatpush1.msra.mxu0 0.0
        %1690 = vmatprep.subr.mxu0 0.0
        %1691 = vmatpush1.msra.mxu0 0.0
        %1692 = vmatprep.subr.mxu0 0.0
        %1693 = vmatpush1.msra.mxu0 0.0
        %1694 = vmatprep.subr.mxu0 0.0
        %1695 = vmatpush1.msra.mxu0 0.0
        %1696 = vmatprep.subr.mxu0 0.0
        %1697 = vmatpush1.msra.mxu0 0.0
        %1698 = vmatprep.subr.mxu0 0.0
        %1699 = vmatpush1.msra.mxu0 0.0
        %1700 = vmatprep.subr.mxu0 0.0
        %1701 = vmatpush1.msra.mxu0 0.0
        %1702 = vmatprep.subr.mxu0 0.0
        %1703 = vmatpush1.msra.mxu0 0.0
        %1704 = vmatprep.subr.mxu0 0.0
        %1705 = vmatpush1.msra.mxu0 0.0
        %1706 = vmatprep.subr.mxu0 0.0
        %1707 = vmatpush1.msra.mxu0 0.0
        %1708 = vmatprep.subr.mxu0 0.0
        %1709 = vmatpush1.msra.mxu0 0.0
        %1710 = vmatprep.subr.mxu0 0.0
        %1711 = vmatpush1.msra.mxu0 0.0
        %1712 = vmatprep.subr.mxu0 0.0
        %1713 = vmatpush1.msra.mxu0 %v1678
        %1714 = vmatprep.subr.mxu0 0.0
        %1715 = vmatpush1.msra.mxu0 %v1677
        %1716 = vmatprep.subr.mxu0 0.0
        %1717 = vmatpush1.msra.mxu0 %v1676
        %1718 = vmatprep.subr.mxu0 0.0
        %1719 = vmatpush1.msra.mxu0 %v1675
        %1720 = vmatprep.subr.mxu0 0.0
        %1721 = vmatpush2.msra.mxu0 0.0
        %1722 = vmatprep.subr.mxu0 0.0
        %1723 = vmatpush2.msra.mxu0 0.0
        %1724 = vmatprep.subr.mxu0 0.0
        %1725 = vmatpush2.msra.mxu0 0.0
        %1726 = vmatprep.subr.mxu0 0.0
        %1727 = vmatpush2.msra.mxu0 0.0
        %1728 = vmatprep.subr.mxu0 0.0
        %1729 = vmatpush2.msra.mxu0 0.0
        %1730 = vmatprep.subr.mxu0 0.0
        %1731 = vmatpush2.msra.mxu0 0.0
        %1732 = vmatprep.subr.mxu0 0.0
        %1733 = vmatpush2.msra.mxu0 0.0
        %1734 = vmatprep.subr.mxu0 0.0
        %1735 = vmatpush2.msra.mxu0 0.0
        %1736 = vmatprep.subr.mxu0 0.0
        %1737 = vmatpush2.msra.mxu0 0.0
        %1738 = vmatprep.subr.mxu0 0.0
        %1739 = vmatpush2.msra.mxu0 0.0
        %1740 = vmatprep.subr.mxu0 0.0
        %1741 = vmatpush2.msra.mxu0 0.0
        %1742 = vmatprep.subr.mxu0 0.0
        %1743 = vmatpush2.msra.mxu0 0.0
        %1744 = vmatprep.subr.mxu0 0.0
        %1745 = vmatpush2.msra.mxu0 0.0
        %1746 = vmatprep.subr.mxu0 0.0
        %1747 = vmatpush2.msra.mxu0 0.0
        %1748 = vmatprep.subr.mxu0 0.0
        %1749 = vmatpush2.msra.mxu0 0.0
        %1750 = vmatprep.subr.mxu0 0.0
        %1751 = vmatpush2.msra.mxu0 0.0
        %1752 = vmatprep.mubr.f32.mxu0 0.0
        %1753 = vmatmul.mubr.f32.gmra.mxu0 %v1680
        %v1754 = vpop.f32.mrf.mxu0
        %v1755 = vadd.f32 0.0, %v1754
        %v1756 = vpop.f32.mrf.mxu0
        %1757 = vmatprep.mubr.f32.mxu0 0.0
        %1758 = vmatmul.mubr.f32.gmra.mxu0 %v1683
        %v1759 = vpop.f32.mrf.mxu0
        %v1760 = vadd.f32 0.0, %v1759
        %v1761 = vpop.f32.mrf.mxu0
        %1762 = vmatprep.mubr.f32.mxu0 0.0
        %1763 = vmatmul.mubr.f32.gmra.mxu0 %v1686
        %v1764 = vpop.f32.mrf.mxu0
        %v1765 = vadd.f32 0.0, %v1764
        %v1766 = vpop.f32.mrf.mxu0
        %1767 = vdwg.mxu0
        %v1768 = vadd.f32 %v1658, %v1755
        %v1769 = vadd.f32 %v1663, %v1760
        %v1770 = vadd.f32 %v1668, %v1765
        %s1771 = scalar_lea.vmem %s6, 2
        %v1772 = vld [vmem:[%s1771] sm:$0x1]
        %v1774 = vlaneseq
        %v1775 = vshrl.u32 %v1774, 7
        %v1776 = vsub.s32 0, %v1775
        %v1777 = vrot.slane %v1772, %v1776
        %v1779 = vadd.f32 %v1768, %v1777
        %v1780 = vadd.f32 %v1769, %v1777
        %v1781 = vadd.f32 %v1770, %v1777
        %v1782 = vtanh.pop %v1779
        %v1783 = vtanh.pop %v1780
        %v1784 = vtanh.pop %v1781
        %v1785 = vsub.f32 %v1782, %v898
        %v1786 = vsub.f32 %v1783, %v899
        %v1787 = vsub.f32 %v1784, %v900
        %v1788 = vmul.f32 %v1496, %v1785
        %v1789 = vmul.f32 %v1498, %v1786
        %v1790 = vmul.f32 %v1500, %v1787
        %v1791 = vadd.f32 %v898, %v1788
        %v1792 = vadd.f32 %v899, %v1789
        %v1793 = vadd.f32 %v900, %v1790
        %1794 = vst.msk [vmem:[%s439] sm:$0xff] %vm910, %v1791
        %1795 = vst.msk [vmem:[%s439 + $0x8] sm:$0xff] %vm910, %v1792
        %1796 = vst.msk [vmem:[%s439 + $0x10] sm:$0xff] %vm910, %v1793
        %s1797 = smul.u32 3, %s25
        %p1798 = scmp.lt.s32.totalorder %s1797, 5
        %s1799 = scalar_select %p1798, %s1797, 5
        %s1800 = smul.addr %s1799, 8
        %s1801 = scalar_lea.vmem %s7, %s1800
        // Predicated region
        $region65: #{tpu_custom_call.1} parent=47 // pred_check
          %p1802 = pneg %p215
        $region66: #{tpu_custom_call.1} parent=47 // pred_check_branch
          %1804 = sbr.rel (%p1802) target = $region68
        $region67: #{tpu_custom_call.1} parent=47 // pred_region
          %s1805 = smul.u32 3, %s25
        $region68: #{tpu_custom_call.1} parent=47 // pred_fallthru
          _
      $region48: #{tpu_custom_call.1} parent=5 // pred_fallthru
        _
      %p1806 = scmp.le.s32.totalorder 2, %s20
      // Predicated region
      $region69: #{tpu_custom_call.1} parent=5 // pred_check
        %p1807 = pneg %p1806
      $region70: #{tpu_custom_call.1} parent=5 // pred_check_branch
        %1809 = sbr.rel (%p1807) target = $region72
      $region71: #{tpu_custom_call.1} parent=5 // pred_region
        %s1810 = ssub.s32 %s20, 2
        // Predicated region
        $region73: #{tpu_custom_call.1} parent=71 // pred_check
          %p1811 = pneg %p221
        $region74: #{tpu_custom_call.1} parent=71 // pred_check_branch
          %1813 = sbr.rel (%p1811) target = $region76
        $region75: #{tpu_custom_call.1} parent=71 // pred_region
          %s1814 = smul.u32 3, %s26
          %p1815 = scmp.lt.s32.totalorder %s1814, 5
          %s1816 = scalar_select %p1815, %s1814, 5
          %s1817 = smul.addr %s1816, 8
          %s1818 = scalar_lea.vmem %s7, %s1817
        $region76: #{tpu_custom_call.1} parent=71 // pred_fallthru
          _
      $region72: #{tpu_custom_call.1} parent=5 // pred_fallthru
        _
    $region6: #{tpu_custom_call.1} parent=1 // loop_footer
      %s24 = sadd.s32 1, %s20
    $region7: #{tpu_custom_call.1} parent=1 // loop_footer_branch
      %19 = sbr.rel target = $region3
    $region8: #{tpu_custom_call.1} parent=1 // loop_exit
      _
    %1819 = vsyncpa [#allocation3], 1
    %s1820 = scalar_lea.sflag [#allocation3], 1
    %1821 = vsyncpa %s1820, 1
    %1822 = vsyncpa [#allocation5], 1
    %s1823 = scalar_lea.sflag [#allocation5], 1
    %1824 = vsyncpa %s1823, 1
    %1825 = vsyncpa [#allocation8], 1

</llo_original>
